<compile_context>
chip_gen: v6e
topology: v6e:2x2x1
jax: 0.10.0
libtpu: 0.0.40
codegen_flags: <defaults>
</compile_context>

<pallas_src>
import functools

import jax
import jax.numpy as jnp
from jax.experimental import pallas as pl
from jax.experimental.pallas import tpu as pltpu

_INV_SQRT2 = 0.7071067811865476


def _erf_approx(z):
    """erf via Abramowitz & Stegun 7.1.26 (max abs err ~1.5e-7), Mosaic-friendly."""
    az = jnp.abs(z)
    t = 1.0 / (1.0 + 0.3275911 * az)
    poly = ((((1.061405429 * t - 1.453152027) * t + 1.421413741) * t
             - 0.284496736) * t + 0.254829592) * t
    y = 1.0 - poly * jnp.exp(-(az * az))
    return jnp.where(z < 0.0, -y, y)


def _gelu_erf(x):
    # PyTorch nn.GELU() default: exact (erf) form.
    return 0.5 * x * (1.0 + _erf_approx(x * _INV_SQRT2))


def _round_up(x, m):
    return ((x + m - 1) // m) * m


def _vmem_budget_bytes():
    try:
        cap = int(pltpu.get_tpu_info().vmem_capacity_bytes)
    except Exception:  # noqa: BLE001 - fall back to the most conservative generation
        cap = 64 * 1024 * 1024  # v7x per-TensorCore VMEM
    # ~25% headroom for compiler scratch / spills:
    #   v7x (64 MiB) -> 48 MiB,  v5e/v6e (128 MiB) -> 96 MiB.
    return (cap * 3) // 4


# ----------------------------------------------------------------------------------
# Kernels
# ----------------------------------------------------------------------------------
def mlp_kernel_resident(x_ref, w_fc_ref, b_fc_ref, w_proj_ref, b_proj_ref, o_ref):
    # x_ref: (tm, C); weights fully VMEM-resident; no reduction axis, no scratch.
    h = jnp.dot(x_ref[...], w_fc_ref[...], preferred_element_type=jnp.float32)
    h = _gelu_erf(h + b_fc_ref[...].astype(jnp.float32))
    y = jnp.dot(h.astype(w_proj_ref.dtype), w_proj_ref[...],
                preferred_element_type=jnp.float32)
    o_ref[...] = (y + b_proj_ref[...].astype(jnp.float32)).astype(o_ref.dtype)


def mlp_kernel_streaming(x_ref, w_fc_ref, b_fc_ref, w_proj_ref, b_proj_ref, o_ref,
                         acc_ref):
    # Hidden dim H is tiled on grid axis 1; W_fc / b_fc / W_proj stream through VMEM.
    kh = pl.program_id(1)
    last = pl.num_programs(1) - 1

    @pl.when(kh == 0)
    def _():
        acc_ref[...] = jnp.zeros_like(acc_ref)

    h = jnp.dot(x_ref[...], w_fc_ref[...], preferred_element_type=jnp.float32)
    h = _gelu_erf(h + b_fc_ref[...].astype(jnp.float32))
    partial = jnp.dot(h.astype(w_proj_ref.dtype), w_proj_ref[...],
                      preferred_element_type=jnp.float32)

    @pl.when(kh != last)
    def _():
        acc_ref[...] += partial

    @pl.when(kh == last)
    def _():
        # Fold the last partial product, b_proj add and dtype cast straight into the
        # output write (saves a (tm, C) f32 acc store + reload per row tile).
        o_ref[...] = (acc_ref[...] + partial
                      + b_proj_ref[...].astype(jnp.float32)).astype(o_ref.dtype)


# ----------------------------------------------------------------------------------
# Wrapper
# ----------------------------------------------------------------------------------
@functools.partial(jax.jit, static_argnames=("tm", "th"))
def mlp_forward(x, w_fc, b_fc, w_proj, b_proj, *, tm=None, th=None):
    """x: (B, T, C); w_fc: (C, 4C); b_fc: (1, 4C); w_proj: (4C, C); b_proj: (1, C)."""
    B, T, C = x.shape
    H = w_fc.shape[1]
    M = B * T

    x_itm = jnp.dtype(x.dtype).itemsize
    w_itm = jnp.dtype(w_fc.dtype).itemsize
    budget = _vmem_budget_bytes()

    # ---- row tile: large (amortizes grid overhead, feeds the MXU), multiple of 8;
    #      keep >= 2 row tiles when possible so both v7x TensorCores get work. -------
    if tm is None:
        tm = 256 if M >= 512 else _round_up(max((M + 1) // 2, 8), 8)
    tm = max(8, _round_up(min(tm, 512), 8))
    tm = min(tm, _round_up(M, 8))
    n_rows = pl.cdiv(M, tm)

    # ---- resident vs. streaming weights (VMEM accounting is conservative: every
    #      operand is counted double-buffered, plus the f32 intermediates). ----------
    def resident_need(tm_):
        return (2 * tm_ * C * x_itm                      # x tile
                + 2 * tm_ * C * x_itm                    # out tile
                + 2 * (C * H + H + H * C + C) * w_itm    # resident weights/biases
                + tm_ * H * 4                            # f32 GELU intermediate
                + tm_ * C * 4)                           # f32 second-matmul result

    def streaming_need(tm_, th_):
        return (2 * tm_ * C * x_itm
                + 2 * tm_ * C * x_itm
                + 2 * (C * th_ + th_ + th_ * C + C) * w_itm
                + tm_ * C * 4                            # accumulator scratch
                + tm_ * th_ * 4                          # f32 GELU intermediate
                + tm_ * C * 4)                           # f32 partial

    if th is None:
        if resident_need(tm) <= budget:
            th = H
        else:
            # Stream the hidden dim: prefer 256-multiples (v6e/v7x MXU is 2x256x256);
            # 128 kept only as a last resort (fine for v5e's 128x128 MXU).
            cands = [c for c in range((H // 256) * 256, 0, -256) if H % c == 0]
            cands += [128] if (H % 128 == 0 and 128 not in cands) else []
            th = next((c for c in cands if streaming_need(tm, c) <= budget),
                      cands[-1] if cands else H)
    assert H % th == 0, f"th={th} must divide H={H}"
    resident = (th == H)
    n_h = H // th

    x2d = x.reshape(M, C)
    vmem_limit = int(budget)

    # ---- cost estimate (scheduling hint): count weight re-streaming when H-tiled ---
    rows_eff = n_rows * tm
    if resident:
        bytes_acc = 2 * M * C * x_itm + (2 * C * H + H + C) * w_itm
    else:
        bytes_acc = 2 * M * C * x_itm + n_rows * (2 * C * H + H) * w_itm + C * w_itm
    cost = pl.CostEstimate(
        flops=int(4 * rows_eff * C * H),          # two matmuls, 2*M*C*H each
        transcendentals=int(rows_eff * H),        # one exp per hidden element (erf)
        bytes_accessed=int(bytes_acc),
    )

    if resident:
        grid = (n_rows,)
        in_specs = [
            pl.BlockSpec((tm, C), lambda i: (i, 0)),   # x row tile
            # Constant index maps -> weights VMEM-resident, fetched once.
            # TODO(synk): pipeline_mode=pl.Buffered(1) here would drop the unused
            #             second buffer for these constant blocks (v7x headroom).
            pl.BlockSpec((C, H), lambda i: (0, 0)),    # W_fc (resident)
            pl.BlockSpec((1, H), lambda i: (0, 0)),    # b_fc (resident)
            pl.BlockSpec((H, C), lambda i: (0, 0)),    # W_proj (resident)
            pl.BlockSpec((1, C), lambda i: (0, 0)),    # b_proj (resident)
        ]
        out_specs = pl.BlockSpec((tm, C), lambda i: (i, 0))
        scratch = []
        kernel = mlp_kernel_resident
        dims = ("parallel",)
    else:
        grid = (n_rows, n_h)
        in_specs = [
            pl.BlockSpec((tm, C), lambda i, k: (i, 0)),  # x rows (constant in k)
            pl.BlockSpec((C, th), lambda i, k: (0, k)),  # W_fc column slice
            pl.BlockSpec((1, th), lambda i, k: (0, k)),  # b_fc slice
            pl.BlockSpec((th, C), lambda i, k: (k, 0)),  # W_proj row slice
            pl.BlockSpec((1, C), lambda i, k: (0, 0)),   # b_proj (constant)
        ]
        out_specs = pl.BlockSpec((tm, C), lambda i, k: (i, 0))
        scratch = [pltpu.VMEM((tm, C), jnp.float32)]
        kernel = mlp_kernel_streaming
        dims = ("parallel", "arbitrary")

    out2d = pl.pallas_call(
        kernel,
        out_shape=jax.ShapeDtypeStruct((M, C), x.dtype),
        grid_spec=pltpu.PrefetchScalarGridSpec(
            num_scalar_prefetch=0,
            grid=grid,
            in_specs=in_specs,
            out_specs=out_specs,
            scratch_shapes=scratch,
        ),
        compiler_params=pltpu.CompilerParams(
            dimension_semantics=dims,
            vmem_limit_bytes=vmem_limit,
        ),
        cost_estimate=cost,
    )(x2d, w_fc, b_fc, w_proj, b_proj)

    return out2d.reshape(B, T, C)


# ----------------------------------------------------------------------------------
# Reference (exact erf ground truth) and self-test
# ----------------------------------------------------------------------------------
def _reference(x, w_fc, b_fc, w_proj, b_proj):
    hp = jax.lax.Precision.HIGHEST
    xf = x.astype(jnp.float32)
    h = jnp.einsum("btc,ch->bth", xf, w_fc.astype(jnp.float32), precision=hp)
    h = h + b_fc.astype(jnp.float32)[0]
    h = 0.5 * h * (1.0 + jax.lax.erf(h * _INV_SQRT2))   # true erf GELU (PyTorch default)
    y = jnp.einsum("bth,hc->btc", h, w_proj.astype(jnp.float32), precision=hp)
    return y + b_proj.astype(jnp.float32)[0]            # dropout p=0 -> identity


if __name__ == "__main__":
    # Small nanoGPT-ish config: n_embd=128 (lane-dense output), hidden H = 512.
    B, T, C = 2, 64, 128
    H = 4 * C

    key = jax.random.PRNGKey(0)
    k_x, k_wf, k_bf, k_wp, k_bp = jax.random.split(key, 5)

    x = jax.random.normal(k_x, (B, T, C), dtype=jnp.float32)
    # nn.Linear weights stored transposed as (in, out): y = x @ W + b.
    w_fc = jax.random.normal(k_wf, (C, H), dtype=jnp.float32) * 0.02
    b_fc = jax.random.normal(k_bf, (1, H), dtype=jnp.float32) * 0.02
    w_proj = jax.random.normal(k_wp, (H, C), dtype=jnp.float32) * 0.02
    b_proj = jax.random.normal(k_bp, (1, C), dtype=jnp.float32) * 0.02

    ref = _reference(x, w_fc, b_fc, w_proj, b_proj)

    # 1) Default path: resident weights, 1-D grid over row tiles, f32 inputs.
    #    (f32 MXU matmul precision is implementation-defined -> modest tolerance.)
    out = jax.block_until_ready(mlp_forward(x, w_fc, b_fc, w_proj, b_proj))
    assert out.shape == (B, T, C)
    assert jnp.allclose(out, ref, atol=5e-3, rtol=5e-3), "resident f32 mismatch"

    # 2) Forced streaming path (H tiled into 2 x 256): exercises the accumulator and
    #    the folded final step.
    out_s = jax.block_until_ready(
        mlp_forward(x, w_fc, b_fc, w_proj, b_proj, tm=64, th=256))
    assert jnp.allclose(out_s, ref, atol=5e-3, rtol=5e-3), "streaming mismatch"

    # 3) Ragged rows (M = 50, not a multiple of the row tile): exercises the masked
    #    OOB tail tile (no jnp.pad copy anymore).
    x_tail = x[:, :25]
    out_t = jax.block_until_ready(mlp_forward(x_tail, w_fc, b_fc, w_proj, b_proj))
    ref_t = _reference(x_tail, w_fc, b_fc, w_proj, b_proj)
    assert out_t.shape == (2, 25, C)
    assert jnp.allclose(out_t, ref_t, atol=5e-3, rtol=5e-3), "ragged-tail mismatch"

    # 4) bf16 MXU-input path (full MXU rate on v5e/v6e/v7x); f32 accumulation and
    #    f32 elementwise GELU inside the kernel.
    xb = x.astype(jnp.bfloat16)
    wfb, bfb = w_fc.astype(jnp.bfloat16), b_fc.astype(jnp.bfloat16)
    wpb, bpb = w_proj.astype(jnp.bfloat16), b_proj.astype(jnp.bfloat16)
    out_bf = jax.block_until_ready(mlp_forward(xb, wfb, bfb, wpb, bpb))
    ref_bf = _reference(xb, wfb, bfb, wpb, bpb)   # bf16-rounded params, f32 math
    assert out_bf.dtype == jnp.bfloat16
    assert jnp.allclose(out_bf.astype(jnp.float32), ref_bf, atol=2e-2, rtol=5e-2), \
        "bf16 mismatch"

    print("KERNEL_OK")
</pallas_src>

<mosaic_0001>
module attributes {stable_mosaic.version = 11 : i64} {
  func.func @mlp_kernel_resident(%arg0: i32, %arg1: memref<64x128xf32, #tpu.memory_space<vmem>>, %arg2: memref<128x512xf32, #tpu.memory_space<vmem>>, %arg3: memref<1x512xf32, #tpu.memory_space<vmem>>, %arg4: memref<512x128xf32, #tpu.memory_space<vmem>>, %arg5: memref<1x128xf32, #tpu.memory_space<vmem>>, %arg6: memref<64x128xf32, #tpu.memory_space<vmem>>) attributes {dimension_semantics = [#tpu.dimension_semantics<parallel>], iteration_bounds = array<i64: 2>, scalar_prefetch = 0 : i64, scratch_operands = 0 : i64, tpu.core_type = #tpu.core_type<tc>, window_params = [{transform_indices = @transform_0, window_bounds = array<i64: 64, 128>}, {pipeline_mode = #tpu.pipeline_mode<synchronous>, transform_indices = @transform_1, window_bounds = array<i64: 128, 512>}, {pipeline_mode = #tpu.pipeline_mode<synchronous>, transform_indices = @transform_2, window_bounds = array<i64: 1, 512>}, {pipeline_mode = #tpu.pipeline_mode<synchronous>, transform_indices = @transform_3, window_bounds = array<i64: 512, 128>}, {pipeline_mode = #tpu.pipeline_mode<synchronous>, transform_indices = @transform_4, window_bounds = array<i64: 1, 128>}, {transform_indices = @transform_5, window_bounds = array<i64: 64, 128>}]} {
    %c0 = arith.constant 0 : index
    %c0_0 = arith.constant 0 : index
    %0 = vector.load %arg1[%c0, %c0_0] : memref<64x128xf32, #tpu.memory_space<vmem>>, vector<64x128xf32>
    %c0_1 = arith.constant 0 : index
    %c0_2 = arith.constant 0 : index
    %1 = vector.load %arg2[%c0_1, %c0_2] : memref<128x512xf32, #tpu.memory_space<vmem>>, vector<128x512xf32>
    %cst = arith.constant dense<0.000000e+00> : vector<64x512xf32>
    %2 = tpu.matmul %0, %1, %cst {dimension_numbers = #tpu.dot_dimension_numbers<[1], [0], [0], [1], [0, 0, 1, 1], [], []>} : vector<64x128xf32>, vector<128x512xf32>, vector<64x512xf32> -> vector<64x512xf32>
    %c0_3 = arith.constant 0 : index
    %c0_4 = arith.constant 0 : index
    %3 = vector.load %arg3[%c0_3, %c0_4] : memref<1x512xf32, #tpu.memory_space<vmem>>, vector<1x512xf32>
    %4 = vector.broadcast %3 : vector<1x512xf32> to vector<64x512xf32>
    %5 = arith.addf %2, %4 : vector<64x512xf32>
    %cst_5 = arith.constant 5.000000e-01 : f32
    %6 = vector.broadcast %cst_5 : f32 to vector<64x512xf32>
    %7 = arith.mulf %6, %5 : vector<64x512xf32>
    %cst_6 = arith.constant 0.707106769 : f32
    %8 = vector.broadcast %cst_6 : f32 to vector<64x512xf32>
    %9 = arith.mulf %5, %8 : vector<64x512xf32>
    %10 = math.absf %9 : vector<64x512xf32>
    %cst_7 = arith.constant 0.327591091 : f32
    %11 = vector.broadcast %cst_7 : f32 to vector<64x512xf32>
    %12 = arith.mulf %11, %10 : vector<64x512xf32>
    %cst_8 = arith.constant 1.000000e+00 : f32
    %13 = vector.broadcast %cst_8 : f32 to vector<64x512xf32>
    %14 = arith.addf %13, %12 : vector<64x512xf32>
    %cst_9 = arith.constant 1.000000e+00 : f32
    %15 = vector.broadcast %cst_9 : f32 to vector<64x512xf32>
    %16 = arith.divf %15, %14 : vector<64x512xf32>
    %cst_10 = arith.constant 1.06140542 : f32
    %17 = vector.broadcast %cst_10 : f32 to vector<64x512xf32>
    %18 = arith.mulf %17, %16 : vector<64x512xf32>
    %cst_11 = arith.constant 1.45315206 : f32
    %19 = vector.broadcast %cst_11 : f32 to vector<64x512xf32>
    %20 = arith.subf %18, %19 : vector<64x512xf32>
    %21 = arith.mulf %20, %16 : vector<64x512xf32>
    %cst_12 = arith.constant 1.42141378 : f32
    %22 = vector.broadcast %cst_12 : f32 to vector<64x512xf32>
    %23 = arith.addf %21, %22 : vector<64x512xf32>
    %24 = arith.mulf %23, %16 : vector<64x512xf32>
    %cst_13 = arith.constant 0.284496725 : f32
    %25 = vector.broadcast %cst_13 : f32 to vector<64x512xf32>
    %26 = arith.subf %24, %25 : vector<64x512xf32>
    %27 = arith.mulf %26, %16 : vector<64x512xf32>
    %cst_14 = arith.constant 0.254829586 : f32
    %28 = vector.broadcast %cst_14 : f32 to vector<64x512xf32>
    %29 = arith.addf %27, %28 : vector<64x512xf32>
    %30 = arith.mulf %29, %16 : vector<64x512xf32>
    %31 = arith.mulf %10, %10 : vector<64x512xf32>
    %cst_15 = arith.constant 0.000000e+00 : f32
    %32 = vector.broadcast %cst_15 : f32 to vector<64x512xf32>
    %33 = arith.subf %32, %31 : vector<64x512xf32>
    %34 = math.exp %33 : vector<64x512xf32>
    %35 = arith.mulf %30, %34 : vector<64x512xf32>
    %cst_16 = arith.constant 1.000000e+00 : f32
    %36 = vector.broadcast %cst_16 : f32 to vector<64x512xf32>
    %37 = arith.subf %36, %35 : vector<64x512xf32>
    %cst_17 = arith.constant 0.000000e+00 : f32
    %38 = vector.broadcast %cst_17 : f32 to vector<64x512xf32>
    %39 = arith.cmpf olt, %9, %38 : vector<64x512xf32>
    %cst_18 = arith.constant 0.000000e+00 : f32
    %40 = vector.broadcast %cst_18 : f32 to vector<64x512xf32>
    %41 = arith.subf %40, %37 : vector<64x512xf32>
    %42 = arith.select %39, %41, %37 : vector<64x512xi1>, vector<64x512xf32>
    %cst_19 = arith.constant 1.000000e+00 : f32
    %43 = vector.broadcast %cst_19 : f32 to vector<64x512xf32>
    %44 = arith.addf %43, %42 : vector<64x512xf32>
    %45 = arith.mulf %7, %44 : vector<64x512xf32>
    %c0_20 = arith.constant 0 : index
    %c0_21 = arith.constant 0 : index
    %46 = vector.load %arg4[%c0_20, %c0_21] : memref<512x128xf32, #tpu.memory_space<vmem>>, vector<512x128xf32>
    %cst_22 = arith.constant dense<0.000000e+00> : vector<64x128xf32>
    %47 = tpu.matmul %45, %46, %cst_22 {dimension_numbers = #tpu.dot_dimension_numbers<[1], [0], [0], [1], [0, 0, 1, 1], [], []>} : vector<64x512xf32>, vector<512x128xf32>, vector<64x128xf32> -> vector<64x128xf32>
    %c0_23 = arith.constant 0 : index
    %c0_24 = arith.constant 0 : index
    %48 = vector.load %arg5[%c0_23, %c0_24] : memref<1x128xf32, #tpu.memory_space<vmem>>, vector<1x128xf32>
    %49 = vector.broadcast %48 : vector<1x128xf32> to vector<64x128xf32>
    %50 = arith.addf %47, %49 : vector<64x128xf32>
    %c0_25 = arith.constant 0 : index
    %c0_26 = arith.constant 0 : index
    %51 = vector.load %arg6[%c0_25, %c0_26] : memref<64x128xf32, #tpu.memory_space<vmem>>, vector<64x128xf32>
    tpu.vector_store %arg6[%c0_25, %c0_26], %50 {strides = array<i32>} : memref<64x128xf32, #tpu.memory_space<vmem>>, vector<64x128xf32>,
    return
  }
  func.func @transform_0(%arg0: i32) -> (i32, i32) {
    %c0_i32 = arith.constant 0 : i32
    %c0_i32_0 = arith.constant 0 : i32
    return %arg0, %c0_i32 : i32, i32
  }
  func.func @transform_1(%arg0: i32) -> (i32, i32) {
    %c0_i32 = arith.constant 0 : i32
    %c0_i32_0 = arith.constant 0 : i32
    %c0_i32_1 = arith.constant 0 : i32
    return %c0_i32, %c0_i32_0 : i32, i32
  }
  func.func @transform_2(%arg0: i32) -> (i32, i32) {
    %c0_i32 = arith.constant 0 : i32
    %c0_i32_0 = arith.constant 0 : i32
    %c0_i32_1 = arith.constant 0 : i32
    return %c0_i32, %c0_i32_0 : i32, i32
  }
  func.func @transform_3(%arg0: i32) -> (i32, i32) {
    %c0_i32 = arith.constant 0 : i32
    %c0_i32_0 = arith.constant 0 : i32
    %c0_i32_1 = arith.constant 0 : i32
    return %c0_i32, %c0_i32_0 : i32, i32
  }
  func.func @transform_4(%arg0: i32) -> (i32, i32) {
    %c0_i32 = arith.constant 0 : i32
    %c0_i32_0 = arith.constant 0 : i32
    %c0_i32_1 = arith.constant 0 : i32
    return %c0_i32, %c0_i32_0 : i32, i32
  }
  func.func @transform_5(%arg0: i32) -> (i32, i32) {
    %c0_i32 = arith.constant 0 : i32
    %c0_i32_0 = arith.constant 0 : i32
    return %arg0, %c0_i32 : i32, i32
  }
}

</mosaic_0001>

<llo_original>
// kernel: mlp_forward.1
$region0: #{mlp_forward.1}
  #allocation0 [shape = 'u32[]', space=smem, size = 0x4, offset = 0x4, fixed_abs, tag = 'smem constant byte address 0x4 - core index']
  #allocation1 [shape = 'u32[144,128]{1,0:T(1,128)}', space=vmem, size = 0x12000, scoped, tag = 'internal scratch']
  %s0 = inlined_call_operand.hbm [shape: f32[128,128], index: 0, kind: input, shape index: {}]
  %s1 = inlined_call_operand.hbm [shape: f32[128,512], index: 1, kind: input, shape index: {}]
  %s2 = inlined_call_operand.vmem [shape: f32[1,512], index: 2, kind: input, shape index: {}]
  %s3 = inlined_call_operand.hbm [shape: f32[512,128], index: 3, kind: input, shape index: {}]
  %s4 = inlined_call_operand.vmem [shape: f32[1,128], index: 4, kind: input, shape index: {}]
  %s5 = inlined_call_operand.hbm [shape: f32[128,128], index: 5, kind: output, shape index: {}]
  %s6 = sld [smem:[#allocation0]]
  $region65: #{mlp_forward.1} parent=0
    _
  %s8 = ssub.s32 1, %s6
  %s9 = scalar_select 0, %s8, %s6
  $region1: #{mlp_forward.1} parent=0
    #allocation2 [shape = 'u8[65536]{0}', space=vmem, size = 0x10000, scoped, tag = 'input window, operand 0']
    #allocation3 [shape = 's32[2]{0}', space=sflag, size = 0x8, scoped, tag = 'scoped memory for mlp_forward.1']
    #allocation4 [shape = 's32[2]{0}', space=sflag, size = 0x8, scoped, tag = 'scoped memory for mlp_forward.1']
    #allocation5 [shape = 'u8[262144]{0}', space=vmem, size = 0x40000, scoped, tag = 'input window, operand 1, single buffered']
    #allocation6 [shape = 's32[1]{0}', space=sflag, size = 0x4, scoped, tag = 'scoped memory for mlp_forward.1']
    #allocation7 [shape = 'u8[262144]{0}', space=vmem, size = 0x40000, scoped, tag = 'input window, operand 3, single buffered']
    #allocation8 [shape = 'u8[65536]{0}', space=vmem, size = 0x10000, scoped, tag = 'output window, operand 0']
    %10 = vsyncpa [#allocation3], 0
    %s11 = scalar_lea.sflag [#allocation3], 1
    %12 = vsyncpa %s11, 0
    %13 = vsyncpa [#allocation6], 0
    %14 = vsyncpa [#allocation4], 0
    %s15 = scalar_lea.sflag [#allocation4], 1
    %16 = vsyncpa %s15, 0
    loop: start=0, step=1, limit=4
    $region2: #{mlp_forward.1} parent=1 // loop_pre_header
      _
    $region3: #{mlp_forward.1} parent=1 // loop_header
      %s18 = sphi 0, %s22
      %p19 = scmp.ge.s32.totalorder %s18, 4
      %s28 = sphi 0, %s30
      %s31 = sphi 0, %s28
      %s32 = sphi 0, %s31
      %s48 = sphi 0, %s32
      %s52 = sphi 0, %s52
      %s54 = sphi 0, %s52
      %s55 = sphi 0, %s54
      %s69 = sphi 0, %s55
      %s73 = sphi 0, %s73
      %s75 = sphi 0, %s73
      %s76 = sphi 0, %s75
      %s90 = sphi 0, %s76
      %s94 = sphi 0, %s94
      %s96 = sphi 0, %s94
      %s97 = sphi 0, %s96
      %s111 = sphi 0, %s97
      %s115 = sphi 0, %s115
      %s117 = sphi 0, %s115
      %s118 = sphi 0, %s117
      %s132 = sphi 0, %s118
      %s138 = sphi 0, %s140
      %s141 = sphi 0, %s138
      %s142 = sphi 0, %s141
      %s158 = sphi 0, %s142
    $region4: #{mlp_forward.1} parent=1 // loop_header_branch
      %21 = sbr.rel (%p19) target = $region8
    $region5: #{mlp_forward.1} parent=1 // loop_body
      %s23 = ssub.s32 %s18, 1
      %s24 = ssub.s32 %s18, 2
      %s25 = sadd.s32 %s18, 1
      %s26 = ssub.s32 %s18, %s25
      %p27 = scmp.eq.s32.totalorder %s26, 0
      %s29 = sadd.s32 %s28, 1
      %s30 = scalar_select %p27, %s28, %s29
      %p33 = pneg %p27
      %p34 = scmp.eq.s32.totalorder %s18, 1
      %p35 = por %p33, %p34
      %p36 = scmp.ne.s32.totalorder %s28, %s31
      %p37 = scmp.eq.s32.totalorder %s18, 0
      %p38 = por %p36, %p37
      %p39 = scmp.ne.s32.totalorder %s28, %s31
      %p40 = scmp.eq.s32.totalorder %s23, 1
      %p41 = por %p39, %p40
      %p42 = scmp.ne.s32.totalorder %s31, %s32
      %p43 = scmp.eq.s32.totalorder %s23, 0
      %p44 = por %p42, %p43
      %p45 = scmp.ne.s32.totalorder %s31, %s32
      %p46 = scmp.eq.s32.totalorder %s24, 1
      %p47 = por %p45, %p46
      %p49 = scmp.ne.s32.totalorder %s32, %s48
      %p50 = scmp.eq.s32.totalorder %s24, 0
      %p51 = por %p49, %p50
      %s53 = sadd.s32 %s52, 1
      %p56 = scmp.eq.s32.totalorder %s18, 1
      %p57 = scmp.ne.s32.totalorder %s52, %s54
      %p58 = scmp.eq.s32.totalorder %s18, 0
      %p59 = por %p57, %p58
      %p60 = scmp.ne.s32.totalorder %s52, %s54
      %p61 = scmp.eq.s32.totalorder %s23, 1
      %p62 = por %p60, %p61
      %p63 = scmp.ne.s32.totalorder %s54, %s55
      %p64 = scmp.eq.s32.totalorder %s23, 0
      %p65 = por %p63, %p64
      %p66 = scmp.ne.s32.totalorder %s54, %s55
      %p67 = scmp.eq.s32.totalorder %s24, 1
      %p68 = por %p66, %p67
      %p70 = scmp.ne.s32.totalorder %s55, %s69
      %p71 = scmp.eq.s32.totalorder %s24, 0
      %p72 = por %p70, %p71
      %s74 = sadd.s32 %s73, 1
      %p77 = scmp.eq.s32.totalorder %s18, 1
      %p78 = scmp.ne.s32.totalorder %s73, %s75
      %p79 = scmp.eq.s32.totalorder %s18, 0
      %p80 = por %p78, %p79
      %p81 = scmp.ne.s32.totalorder %s73, %s75
      %p82 = scmp.eq.s32.totalorder %s23, 1
      %p83 = por %p81, %p82
      %p84 = scmp.ne.s32.totalorder %s75, %s76
      %p85 = scmp.eq.s32.totalorder %s23, 0
      %p86 = por %p84, %p85
      %p87 = scmp.ne.s32.totalorder %s75, %s76
      %p88 = scmp.eq.s32.totalorder %s24, 1
      %p89 = por %p87, %p88
      %p91 = scmp.ne.s32.totalorder %s76, %s90
      %p92 = scmp.eq.s32.totalorder %s24, 0
      %p93 = por %p91, %p92
      %s95 = sadd.s32 %s94, 1
      %p98 = scmp.eq.s32.totalorder %s18, 1
      %p99 = scmp.ne.s32.totalorder %s94, %s96
      %p100 = scmp.eq.s32.totalorder %s18, 0
      %p101 = por %p99, %p100
      %p102 = scmp.ne.s32.totalorder %s94, %s96
      %p103 = scmp.eq.s32.totalorder %s23, 1
      %p104 = por %p102, %p103
      %p105 = scmp.ne.s32.totalorder %s96, %s97
      %p106 = scmp.eq.s32.totalorder %s23, 0
      %p107 = por %p105, %p106
      %p108 = scmp.ne.s32.totalorder %s96, %s97
      %p109 = scmp.eq.s32.totalorder %s24, 1
      %p110 = por %p108, %p109
      %p112 = scmp.ne.s32.totalorder %s97, %s111
      %p113 = scmp.eq.s32.totalorder %s24, 0
      %p114 = por %p112, %p113
      %s116 = sadd.s32 %s115, 1
      %p119 = scmp.eq.s32.totalorder %s18, 1
      %p120 = scmp.ne.s32.totalorder %s115, %s117
      %p121 = scmp.eq.s32.totalorder %s18, 0
      %p122 = por %p120, %p121
      %p123 = scmp.ne.s32.totalorder %s115, %s117
      %p124 = scmp.eq.s32.totalorder %s23, 1
      %p125 = por %p123, %p124
      %p126 = scmp.ne.s32.totalorder %s117, %s118
      %p127 = scmp.eq.s32.totalorder %s23, 0
      %p128 = por %p126, %p127
      %p129 = scmp.ne.s32.totalorder %s117, %s118
      %p130 = scmp.eq.s32.totalorder %s24, 1
      %p131 = por %p129, %p130
      %p133 = scmp.ne.s32.totalorder %s118, %s132
      %p134 = scmp.eq.s32.totalorder %s24, 0
      %p135 = por %p133, %p134
      %s136 = ssub.s32 %s18, %s25
      %p137 = scmp.eq.s32.totalorder %s136, 0
      %s139 = sadd.s32 %s138, 1
      %s140 = scalar_select %p137, %s138, %s139
      %p143 = pneg %p137
      %p144 = scmp.eq.s32.totalorder %s18, 1
      %p145 = por %p143, %p144
      %p146 = scmp.ne.s32.totalorder %s138, %s141
      %p147 = scmp.eq.s32.totalorder %s18, 0
      %p148 = por %p146, %p147
      %p149 = scmp.ne.s32.totalorder %s138, %s141
      %p150 = scmp.eq.s32.totalorder %s23, 1
      %p151 = por %p149, %p150
      %p152 = scmp.ne.s32.totalorder %s141, %s142
      %p153 = scmp.eq.s32.totalorder %s23, 0
      %p154 = por %p152, %p153
      %p155 = scmp.ne.s32.totalorder %s141, %s142
      %p156 = scmp.eq.s32.totalorder %s24, 1
      %p157 = por %p155, %p156
      %p159 = scmp.ne.s32.totalorder %s142, %s158
      %p160 = scmp.eq.s32.totalorder %s24, 0
      %p161 = por %p159, %p160
      %p162 = scmp.le.s32.totalorder 1, %s18
      %p163 = scmp.lt.s32.totalorder %s18, 3
      %p164 = pnand %p162, %p163
      %p165 = pneg %p164
      // Predicated region
      $region9: #{mlp_forward.1} parent=5 // pred_check
        _
      $region10: #{mlp_forward.1} parent=5 // pred_check_branch
        %167 = sbr.rel (%p164) target = $region12
      $region11: #{mlp_forward.1} parent=5 // pred_region
        %s168 = ssub.s32 %s18, 1
        // Predicated region
        $region13: #{mlp_forward.1} parent=11 // pred_check
          %p169 = pneg %p65
        $region14: #{mlp_forward.1} parent=11 // pred_check_branch
          %171 = sbr.rel (%p169) target = $region16
        $region15: #{mlp_forward.1} parent=11 // pred_region
          %s173 = ssub.s32 8192, 8192
          %174 = vsyncadd [#allocation6], %s173
          %s175 = sshll.u32 [#allocation5], 4
          %s176 = int_to_ptr.vmem [resolvable:$true] %s175
          %181 = dma.hbm_to_vmem [thread:$0]  %s1, 8192, %s176, [#allocation6], 512, 512, 32
        $region16: #{mlp_forward.1} parent=11 // pred_fallthru
          _
        // Predicated region
        $region17: #{mlp_forward.1} parent=11 // pred_check
          %p182 = pneg %p86
        $region18: #{mlp_forward.1} parent=11 // pred_check_branch
          %184 = sbr.rel (%p182) target = $region20
        $region19: #{mlp_forward.1} parent=11 // pred_region
          _
        $region20: #{mlp_forward.1} parent=11 // pred_fallthru
          _
        // Predicated region
        $region21: #{mlp_forward.1} parent=11 // pred_check
          %p185 = pneg %p107
        $region22: #{mlp_forward.1} parent=11 // pred_check_branch
          %187 = sbr.rel (%p185) target = $region24
        $region23: #{mlp_forward.1} parent=11 // pred_region
          %s189 = ssub.s32 8192, 8192
          %190 = vsyncadd [#allocation6], %s189
          %s191 = sshll.u32 [#allocation7], 4
          %s192 = int_to_ptr.vmem [resolvable:$true] %s191
          %197 = dma.hbm_to_vmem [thread:$0]  %s3, 8192, %s192, [#allocation6], 128, 128, 8
        $region24: #{mlp_forward.1} parent=11 // pred_fallthru
          _
        // Predicated region
        $region25: #{mlp_forward.1} parent=11 // pred_check
          %p198 = pneg %p128
        $region26: #{mlp_forward.1} parent=11 // pred_check_branch
          %200 = sbr.rel (%p198) target = $region28
        $region27: #{mlp_forward.1} parent=11 // pred_region
          _
        $region28: #{mlp_forward.1} parent=11 // pred_fallthru
          _
      $region12: #{mlp_forward.1} parent=5 // pred_fallthru
        _
      %p201 = scmp.lt.s32.totalorder %s18, 2
      // Predicated region
      $region29: #{mlp_forward.1} parent=5 // pred_check
        %p202 = pneg %p201
      $region30: #{mlp_forward.1} parent=5 // pred_check_branch
        %204 = sbr.rel (%p202) target = $region32
      $region31: #{mlp_forward.1} parent=5 // pred_region
        // Predicated region
        $region33: #{mlp_forward.1} parent=31 // pred_check
          %p205 = pneg %p38
        $region34: #{mlp_forward.1} parent=31 // pred_check_branch
          %207 = sbr.rel (%p205) target = $region36
        $region35: #{mlp_forward.1} parent=31 // pred_region
          %s208 = sand.u32 %s28, 1
          %s209 = scalar_lea.sflag [#allocation3], %s208
          %s210 = sand.u32 %s28, 1
          %s211 = smul.addr %s210, 64
          %s212 = scalar_lea.vmem [#allocation2], %s211
          %s213 = smul.u32 8, %s18
          %s215 = ssub.s32 1024, 1024
          %216 = vsyncadd %s209, %s215
          %s217 = smul.addr %s213, 128
          %s218 = scalar_lea.hbm %s0, %s217
          %s219 = sshll.u32 %s212, 4
          %s220 = int_to_ptr.vmem [resolvable:$true] %s219
          %225 = dma.hbm_to_vmem [thread:$0]  %s218, 1024, %s220, %s209, 128, 128, 8
        $region36: #{mlp_forward.1} parent=31 // pred_fallthru
          _
      $region32: #{mlp_forward.1} parent=5 // pred_fallthru
        _
      %p226 = scmp.le.s32.totalorder 1, %s18
      %p227 = scmp.lt.s32.totalorder %s18, 3
      %p228 = pnand %p226, %p227
      %p229 = pneg %p228
      // Predicated region
      $region37: #{mlp_forward.1} parent=5 // pred_check
        _
      $region38: #{mlp_forward.1} parent=5 // pred_check_branch
        %231 = sbr.rel (%p228) target = $region40
      $region39: #{mlp_forward.1} parent=5 // pred_region
        %s232 = ssub.s32 %s18, 1
        %s233 = sand.u32 %s31, 1
        %s234 = scalar_lea.sflag [#allocation3], %s233
        %s235 = sand.u32 %s31, 1
        %s236 = smul.addr %s235, 64
        %s237 = scalar_lea.vmem [#allocation2], %s236
        // Predicated region
        $region41: #{mlp_forward.1} parent=39 // pred_check
          %p238 = pneg %p44
        $region42: #{mlp_forward.1} parent=39 // pred_check_branch
          %240 = sbr.rel (%p238) target = $region44
        $region43: #{mlp_forward.1} parent=39 // pred_region
          %241 = dma.done %s234, 1024
        $region44: #{mlp_forward.1} parent=39 // pred_fallthru
          _
        // Predicated region
        $region45: #{mlp_forward.1} parent=39 // pred_check
          %p242 = pneg %p65
        $region46: #{mlp_forward.1} parent=39 // pred_check_branch
          %244 = sbr.rel (%p242) target = $region48
        $region47: #{mlp_forward.1} parent=39 // pred_region
          %245 = dma.done [#allocation6], 8192
        $region48: #{mlp_forward.1} parent=39 // pred_fallthru
          _
        // Predicated region
        $region49: #{mlp_forward.1} parent=39 // pred_check
          %p246 = pneg %p107
        $region50: #{mlp_forward.1} parent=39 // pred_check_branch
          %248 = sbr.rel (%p246) target = $region52
        $region51: #{mlp_forward.1} parent=39 // pred_region
          %249 = dma.done [#allocation6], 8192
        $region52: #{mlp_forward.1} parent=39 // pred_fallthru
          _
        %s250 = sand.u32 %s31, 1
        %s251 = scalar_lea.sflag [#allocation3], %s250
        %s252 = sand.u32 %s31, 1
        %s253 = smul.addr %s252, 64
        %s254 = scalar_lea.vmem [#allocation2], %s253
        %p255 = pneg %p44
        %p256 = pneg %p41
        %p257 = pneg %p65
        %p258 = pneg %p62
        %p259 = pneg %p86
        %p260 = pneg %p83
        %p261 = pneg %p107
        %p262 = pneg %p104
        %p263 = pneg %p128
        %p264 = pneg %p125
        %p265 = pneg %p154
        %p266 = pneg %p151
        %s267 = sand.u32 %s141, 1
        %s268 = scalar_lea.sflag [#allocation4], %s267
        %s269 = sand.u32 %s141, 1
        %s270 = smul.addr %s269, 64
        %s271 = scalar_lea.vmem [#allocation8], %s270
        %s272 = smul.u32 8, %s23
        %s273 = smul.u32 8, %s23
        %v274 = vld [vmem:[%s237] sm:$0xff]
        %v275 = vld [vmem:[%s237 + $0x8] sm:$0xff]
        %v276 = vld [vmem:[%s237 + $0x10] sm:$0xff]
        %v277 = vld [vmem:[%s237 + $0x18] sm:$0xff]
        %v278 = vld [vmem:[%s237 + $0x20] sm:$0xff]
        %v279 = vld [vmem:[%s237 + $0x28] sm:$0xff]
        %v280 = vld [vmem:[%s237 + $0x30] sm:$0xff]
        %v281 = vld [vmem:[%s237 + $0x38] sm:$0xff]
        %v282 = vld [vmem:[#allocation5] sm:$0xff]
        %v283 = vld [vmem:[#allocation5 + $0x8] sm:$0xff]
        %v284 = vld [vmem:[#allocation5 + $0x10] sm:$0xff]
        %v285 = vld [vmem:[#allocation5 + $0x18] sm:$0xff]
        %v286 = vld [vmem:[#allocation5 + $0x20] sm:$0xff]
        %v287 = vld [vmem:[#allocation5 + $0x28] sm:$0xff]
        %v288 = vld [vmem:[#allocation5 + $0x30] sm:$0xff]
        %v289 = vld [vmem:[#allocation5 + $0x38] sm:$0xff]
        %v290 = vld [vmem:[#allocation5 + $0x40] sm:$0xff]
        %v291 = vld [vmem:[#allocation5 + $0x48] sm:$0xff]
        %v292 = vld [vmem:[#allocation5 + $0x50] sm:$0xff]
        %v293 = vld [vmem:[#allocation5 + $0x58] sm:$0xff]
        %v294 = vld [vmem:[#allocation5 + $0x60] sm:$0xff]
        %v295 = vld [vmem:[#allocation5 + $0x68] sm:$0xff]
        %v296 = vld [vmem:[#allocation5 + $0x70] sm:$0xff]
        %v297 = vld [vmem:[#allocation5 + $0x78] sm:$0xff]
        %v298 = vld [vmem:[#allocation5 + $0x80] sm:$0xff]
        %v299 = vld [vmem:[#allocation5 + $0x88] sm:$0xff]
        %v300 = vld [vmem:[#allocation5 + $0x90] sm:$0xff]
        %v301 = vld [vmem:[#allocation5 + $0x98] sm:$0xff]
        %v302 = vld [vmem:[#allocation5 + $0xa0] sm:$0xff]
        %v303 = vld [vmem:[#allocation5 + $0xa8] sm:$0xff]
        %v304 = vld [vmem:[#allocation5 + $0xb0] sm:$0xff]
        %v305 = vld [vmem:[#allocation5 + $0xb8] sm:$0xff]
        %v306 = vld [vmem:[#allocation5 + $0xc0] sm:$0xff]
        %v307 = vld [vmem:[#allocation5 + $0xc8] sm:$0xff]
        %v308 = vld [vmem:[#allocation5 + $0xd0] sm:$0xff]
        %v309 = vld [vmem:[#allocation5 + $0xd8] sm:$0xff]
        %v310 = vld [vmem:[#allocation5 + $0xe0] sm:$0xff]
        %v311 = vld [vmem:[#allocation5 + $0xe8] sm:$0xff]
        %v312 = vld [vmem:[#allocation5 + $0xf0] sm:$0xff]
        %v313 = vld [vmem:[#allocation5 + $0xf8] sm:$0xff]
        %v314 = vld [vmem:[#allocation5 + $0x100] sm:$0xff]
        %v315 = vld [vmem:[#allocation5 + $0x108] sm:$0xff]
        %v316 = vld [vmem:[#allocation5 + $0x110] sm:$0xff]
        %v317 = vld [vmem:[#allocation5 + $0x118] sm:$0xff]
        %v318 = vld [vmem:[#allocation5 + $0x120] sm:$0xff]
        %v319 = vld [vmem:[#allocation5 + $0x128] sm:$0xff]
        %v320 = vld [vmem:[#allocation5 + $0x130] sm:$0xff]
        %v321 = vld [vmem:[#allocation5 + $0x138] sm:$0xff]
        %v322 = vld [vmem:[#allocation5 + $0x140] sm:$0xff]
        %v323 = vld [vmem:[#allocation5 + $0x148] sm:$0xff]
        %v324 = vld [vmem:[#allocation5 + $0x150] sm:$0xff]
        %v325 = vld [vmem:[#allocation5 + $0x158] sm:$0xff]
        %v326 = vld [vmem:[#allocation5 + $0x160] sm:$0xff]
        %v327 = vld [vmem:[#allocation5 + $0x168] sm:$0xff]
        %v328 = vld [vmem:[#allocation5 + $0x170] sm:$0xff]
        %v329 = vld [vmem:[#allocation5 + $0x178] sm:$0xff]
        %v330 = vld [vmem:[#allocation5 + $0x180] sm:$0xff]
        %v331 = vld [vmem:[#allocation5 + $0x188] sm:$0xff]
        %v332 = vld [vmem:[#allocation5 + $0x190] sm:$0xff]
        %v333 = vld [vmem:[#allocation5 + $0x198] sm:$0xff]
        %v334 = vld [vmem:[#allocation5 + $0x1a0] sm:$0xff]
        %v335 = vld [vmem:[#allocation5 + $0x1a8] sm:$0xff]
        %v336 = vld [vmem:[#allocation5 + $0x1b0] sm:$0xff]
        %v337 = vld [vmem:[#allocation5 + $0x1b8] sm:$0xff]
        %v338 = vld [vmem:[#allocation5 + $0x1c0] sm:$0xff]
        %v339 = vld [vmem:[#allocation5 + $0x1c8] sm:$0xff]
        %v340 = vld [vmem:[#allocation5 + $0x1d0] sm:$0xff]
        %v341 = vld [vmem:[#allocation5 + $0x1d8] sm:$0xff]
        %v342 = vld [vmem:[#allocation5 + $0x1e0] sm:$0xff]
        %v343 = vld [vmem:[#allocation5 + $0x1e8] sm:$0xff]
        %v344 = vld [vmem:[#allocation5 + $0x1f0] sm:$0xff]
        %v345 = vld [vmem:[#allocation5 + $0x1f8] sm:$0xff]
        %v346 = vld [vmem:[%s2] sm:$0xf]
        %v348 = vlaneseq
        %v349 = vshrl.u32 %v348, 7
        %v350 = vsub.s32 0, %v349
        %v351 = vrot.slane %v346, %v350
        %v352 = vlaneseq
        %v353 = vshrl.u32 %v352, 7
        %v354 = vsub.s32 1, %v353
        %v355 = vrot.slane %v346, %v354
        %v356 = vlaneseq
        %v357 = vshrl.u32 %v356, 7
        %v358 = vsub.s32 2, %v357
        %v359 = vrot.slane %v346, %v358
        %v360 = vlaneseq
        %v361 = vshrl.u32 %v360, 7
        %v362 = vsub.s32 3, %v361
        %v363 = vrot.slane %v346, %v362
        %368 = vmatprep.subr.mxu0 %v343
        %369 = vmatpush1.msra.mxu0 %v342
        %370 = vmatprep.subr.mxu0 %v339
        %371 = vmatpush1.msra.mxu0 %v338
        %372 = vmatprep.subr.mxu0 %v335
        %373 = vmatpush1.msra.mxu0 %v334
        %374 = vmatprep.subr.mxu0 %v331
        %375 = vmatpush1.msra.mxu0 %v330
        %376 = vmatprep.subr.mxu0 %v327
        %377 = vmatpush1.msra.mxu0 %v326
        %378 = vmatprep.subr.mxu0 %v323
        %379 = vmatpush1.msra.mxu0 %v322
        %380 = vmatprep.subr.mxu0 %v319
        %381 = vmatpush1.msra.mxu0 %v318
        %382 = vmatprep.subr.mxu0 %v315
        %383 = vmatpush1.msra.mxu0 %v314
        %384 = vmatprep.subr.mxu0 %v311
        %385 = vmatpush1.msra.mxu0 %v310
        %386 = vmatprep.subr.mxu0 %v307
        %387 = vmatpush1.msra.mxu0 %v306
        %388 = vmatprep.subr.mxu0 %v303
        %389 = vmatpush1.msra.mxu0 %v302
        %390 = vmatprep.subr.mxu0 %v299
        %391 = vmatpush1.msra.mxu0 %v298
        %392 = vmatprep.subr.mxu0 %v295
        %393 = vmatpush1.msra.mxu0 %v294
        %394 = vmatprep.subr.mxu0 %v291
        %395 = vmatpush1.msra.mxu0 %v290
        %396 = vmatprep.subr.mxu0 %v287
        %397 = vmatpush1.msra.mxu0 %v286
        %398 = vmatprep.subr.mxu0 %v283
        %399 = vmatpush1.msra.mxu0 %v282
        %400 = vmatprep.subr.mxu0 0.0
        %401 = vmatpush2.msra.mxu0 0.0
        %402 = vmatprep.subr.mxu0 0.0
        %403 = vmatpush2.msra.mxu0 0.0
        %404 = vmatprep.subr.mxu0 0.0
        %405 = vmatpush2.msra.mxu0 0.0
        %406 = vmatprep.subr.mxu0 0.0
        %407 = vmatpush2.msra.mxu0 0.0
        %408 = vmatprep.subr.mxu0 0.0
        %409 = vmatpush2.msra.mxu0 0.0
        %410 = vmatprep.subr.mxu0 0.0
        %411 = vmatpush2.msra.mxu0 0.0
        %412 = vmatprep.subr.mxu0 0.0
        %413 = vmatpush2.msra.mxu0 0.0
        %414 = vmatprep.subr.mxu0 0.0
        %415 = vmatpush2.msra.mxu0 0.0
        %416 = vmatprep.subr.mxu0 0.0
        %417 = vmatpush2.msra.mxu0 0.0
        %418 = vmatprep.subr.mxu0 0.0
        %419 = vmatpush2.msra.mxu0 0.0
        %420 = vmatprep.subr.mxu0 0.0
        %421 = vmatpush2.msra.mxu0 0.0
        %422 = vmatprep.subr.mxu0 0.0
        %423 = vmatpush2.msra.mxu0 0.0
        %424 = vmatprep.subr.mxu0 0.0
        %425 = vmatpush2.msra.mxu0 0.0
        %426 = vmatprep.subr.mxu0 0.0
        %427 = vmatpush2.msra.mxu0 0.0
        %428 = vmatprep.subr.mxu0 0.0
        %429 = vmatpush2.msra.mxu0 0.0
        %430 = vmatprep.subr.mxu0 0.0
        %431 = vmatpush2.msra.mxu0 0.0
        %432 = vmatprep.mubr.f32.mxu0 0.0
        %433 = vmatmul.mubr.f32.gmra.mxu0 %v274
        %v434 = vpop.f32.mrf.mxu0
        %v435 = vadd.f32 %v351, %v434
        %v436 = vpop.f32.mrf.mxu0
        %v437 = vadd.f32 %v355, %v436
        %438 = vmatprep.mubr.f32.mxu0 0.0
        %439 = vmatmul.mubr.f32.gmra.mxu0 %v275
        %v440 = vpop.f32.mrf.mxu0
        %v441 = vadd.f32 %v351, %v440
        %v442 = vpop.f32.mrf.mxu0
        %v443 = vadd.f32 %v355, %v442
        %444 = vmatprep.mubr.f32.mxu0 0.0
        %445 = vmatmul.mubr.f32.gmra.mxu0 %v276
        %v446 = vpop.f32.mrf.mxu0
        %v447 = vadd.f32 %v351, %v446
        %v448 = vpop.f32.mrf.mxu0
        %v449 = vadd.f32 %v355, %v448
        %450 = vmatprep.mubr.f32.mxu0 0.0
        %451 = vmatmul.mubr.f32.gmra.mxu0 %v277
        %v452 = vpop.f32.mrf.mxu0
        %v453 = vadd.f32 %v351, %v452
        %v454 = vpop.f32.mrf.mxu0
        %v455 = vadd.f32 %v355, %v454
        %456 = vmatprep.mubr.f32.mxu0 0.0
        %457 = vmatmul.mubr.f32.gmra.mxu0 %v278
        %v458 = vpop.f32.mrf.mxu0
        %v459 = vadd.f32 %v351, %v458
        %v460 = vpop.f32.mrf.mxu0
        %v461 = vadd.f32 %v355, %v460
        %462 = vmatprep.mubr.f32.mxu0 0.0
        %463 = vmatmul.mubr.f32.gmra.mxu0 %v279
        %v464 = vpop.f32.mrf.mxu0
        %v465 = vadd.f32 %v351, %v464
        %v466 = vpop.f32.mrf.mxu0
        %v467 = vadd.f32 %v355, %v466
        %468 = vmatprep.mubr.f32.mxu0 0.0
        %469 = vmatmul.mubr.f32.gmra.mxu0 %v280
        %v470 = vpop.f32.mrf.mxu0
        %v471 = vadd.f32 %v351, %v470
        %v472 = vpop.f32.mrf.mxu0
        %v473 = vadd.f32 %v355, %v472
        %474 = vmatprep.mubr.f32.mxu0 0.0
        %475 = vmatmul.mubr.f32.gmra.mxu0 %v281
        %v476 = vpop.f32.mrf.mxu0
        %v477 = vadd.f32 %v351, %v476
        %v478 = vpop.f32.mrf.mxu0
        %v479 = vadd.f32 %v355, %v478
        %480 = vdwg.mxu0
        %481 = vmatprep.subr.mxu0 %v345
        %482 = vmatpush1.msra.mxu0 %v344
        %483 = vmatprep.subr.mxu0 %v341
        %484 = vmatpush1.msra.mxu0 %v340
        %485 = vmatprep.subr.mxu0 %v337
        %486 = vmatpush1.msra.mxu0 %v336
        %487 = vmatprep.subr.mxu0 %v333
        %488 = vmatpush1.msra.mxu0 %v332
        %489 = vmatprep.subr.mxu0 %v329
        %490 = vmatpush1.msra.mxu0 %v328
        %491 = vmatprep.subr.mxu0 %v325
        %492 = vmatpush1.msra.mxu0 %v324
        %493 = vmatprep.subr.mxu0 %v321
        %494 = vmatpush1.msra.mxu0 %v320
        %495 = vmatprep.subr.mxu0 %v317
        %496 = vmatpush1.msra.mxu0 %v316
        %497 = vmatprep.subr.mxu0 %v313
        %498 = vmatpush1.msra.mxu0 %v312
        %499 = vmatprep.subr.mxu0 %v309
        %500 = vmatpush1.msra.mxu0 %v308
        %501 = vmatprep.subr.mxu0 %v305
        %502 = vmatpush1.msra.mxu0 %v304
        %503 = vmatprep.subr.mxu0 %v301
        %504 = vmatpush1.msra.mxu0 %v300
        %505 = vmatprep.subr.mxu0 %v297
        %506 = vmatpush1.msra.mxu0 %v296
        %507 = vmatprep.subr.mxu0 %v293
        %508 = vmatpush1.msra.mxu0 %v292
        %509 = vmatprep.subr.mxu0 %v289
        %510 = vmatpush1.msra.mxu0 %v288
        %511 = vmatprep.subr.mxu0 %v285
        %512 = vmatpush1.msra.mxu0 %v284
        %513 = vmatprep.subr.mxu0 0.0
        %514 = vmatpush2.msra.mxu0 0.0
        %515 = vmatprep.subr.mxu0 0.0
        %516 = vmatpush2.msra.mxu0 0.0
        %517 = vmatprep.subr.mxu0 0.0
        %518 = vmatpush2.msra.mxu0 0.0
        %519 = vmatprep.subr.mxu0 0.0
        %520 = vmatpush2.msra.mxu0 0.0
        %521 = vmatprep.subr.mxu0 0.0
        %522 = vmatpush2.msra.mxu0 0.0
        %523 = vmatprep.subr.mxu0 0.0
        %524 = vmatpush2.msra.mxu0 0.0
        %525 = vmatprep.subr.mxu0 0.0
        %526 = vmatpush2.msra.mxu0 0.0
        %527 = vmatprep.subr.mxu0 0.0
        %528 = vmatpush2.msra.mxu0 0.0
        %529 = vmatprep.subr.mxu0 0.0
        %530 = vmatpush2.msra.mxu0 0.0
        %531 = vmatprep.subr.mxu0 0.0
        %532 = vmatpush2.msra.mxu0 0.0
        %533 = vmatprep.subr.mxu0 0.0
        %534 = vmatpush2.msra.mxu0 0.0
        %535 = vmatprep.subr.mxu0 0.0
        %536 = vmatpush2.msra.mxu0 0.0
        %537 = vmatprep.subr.mxu0 0.0
        %538 = vmatpush2.msra.mxu0 0.0
        %539 = vmatprep.subr.mxu0 0.0
        %540 = vmatpush2.msra.mxu0 0.0
        %541 = vmatprep.subr.mxu0 0.0
        %542 = vmatpush2.msra.mxu0 0.0
        %543 = vmatprep.subr.mxu0 0.0
        %544 = vmatpush2.msra.mxu0 0.0
        %545 = vmatprep.mubr.f32.mxu0 0.0
        %546 = vmatmul.mubr.f32.gmra.mxu0 %v274
        %v547 = vpop.f32.mrf.mxu0
        %v548 = vadd.f32 %v359, %v547
        %v549 = vpop.f32.mrf.mxu0
        %v550 = vadd.f32 %v363, %v549
        %551 = vmatprep.mubr.f32.mxu0 0.0
        %552 = vmatmul.mubr.f32.gmra.mxu0 %v275
        %v553 = vpop.f32.mrf.mxu0
        %v554 = vadd.f32 %v359, %v553
        %v555 = vpop.f32.mrf.mxu0
        %v556 = vadd.f32 %v363, %v555
        %557 = vmatprep.mubr.f32.mxu0 0.0
        %558 = vmatmul.mubr.f32.gmra.mxu0 %v276
        %v559 = vpop.f32.mrf.mxu0
        %v560 = vadd.f32 %v359, %v559
        %v561 = vpop.f32.mrf.mxu0
        %v562 = vadd.f32 %v363, %v561
        %563 = vmatprep.mubr.f32.mxu0 0.0
        %564 = vmatmul.mubr.f32.gmra.mxu0 %v277
        %v565 = vpop.f32.mrf.mxu0
        %v566 = vadd.f32 %v359, %v565
        %v567 = vpop.f32.mrf.mxu0
        %v568 = vadd.f32 %v363, %v567
        %569 = vmatprep.mubr.f32.mxu0 0.0
        %570 = vmatmul.mubr.f32.gmra.mxu0 %v278
        %v571 = vpop.f32.mrf.mxu0
        %v572 = vadd.f32 %v359, %v571
        %v573 = vpop.f32.mrf.mxu0
        %v574 = vadd.f32 %v363, %v573
        %575 = vmatprep.mubr.f32.mxu0 0.0
        %576 = vmatmul.mubr.f32.gmra.mxu0 %v279
        %v577 = vpop.f32.mrf.mxu0
        %v578 = vadd.f32 %v359, %v577
        %v579 = vpop.f32.mrf.mxu0
        %v580 = vadd.f32 %v363, %v579
        %581 = vmatprep.mubr.f32.mxu0 0.0
        %582 = vmatmul.mubr.f32.gmra.mxu0 %v280
        %v583 = vpop.f32.mrf.mxu0
        %v584 = vadd.f32 %v359, %v583
        %v585 = vpop.f32.mrf.mxu0
        %v586 = vadd.f32 %v363, %v585
        %587 = vmatprep.mubr.f32.mxu0 0.0
        %588 = vmatmul.mubr.f32.gmra.mxu0 %v281
        %v589 = vpop.f32.mrf.mxu0
        %v590 = vadd.f32 %v359, %v589
        %v591 = vpop.f32.mrf.mxu0
        %v592 = vadd.f32 %v363, %v591
        %593 = vdwg.mxu0
        %v594 = vmul.f32 %v435, 0.5
        %v595 = vmul.f32 %v437, 0.5
        %v596 = vmul.f32 %v548, 0.5
        %v597 = vmul.f32 %v550, 0.5
        %v598 = vmul.f32 %v441, 0.5
        %v599 = vmul.f32 %v443, 0.5
        %v600 = vmul.f32 %v554, 0.5
        %v601 = vmul.f32 %v556, 0.5
        %v602 = vmul.f32 %v447, 0.5
        %v603 = vmul.f32 %v449, 0.5
        %v604 = vmul.f32 %v560, 0.5
        %v605 = vmul.f32 %v562, 0.5
        %v606 = vmul.f32 %v453, 0.5
        %v607 = vmul.f32 %v455, 0.5
        %v608 = vmul.f32 %v566, 0.5
        %v609 = vmul.f32 %v568, 0.5
        %v610 = vmul.f32 %v459, 0.5
        %v611 = vmul.f32 %v461, 0.5
        %v612 = vmul.f32 %v572, 0.5
        %v613 = vmul.f32 %v574, 0.5
        %v614 = vmul.f32 %v465, 0.5
        %v615 = vmul.f32 %v467, 0.5
        %v616 = vmul.f32 %v578, 0.5
        %v617 = vmul.f32 %v580, 0.5
        %v618 = vmul.f32 %v471, 0.5
        %v619 = vmul.f32 %v473, 0.5
        %v620 = vmul.f32 %v584, 0.5
        %v621 = vmul.f32 %v586, 0.5
        %v622 = vmul.f32 %v477, 0.5
        %v623 = vmul.f32 %v479, 0.5
        %v624 = vmul.f32 %v590, 0.5
        %v625 = vmul.f32 %v592, 0.5
        %v626 = vmul.f32 %v435, 0.70710677
        %v627 = vmul.f32 %v437, 0.70710677
        %v628 = vmul.f32 %v548, 0.70710677
        %v629 = vmul.f32 %v550, 0.70710677
        %v630 = vmul.f32 %v441, 0.70710677
        %v631 = vmul.f32 %v443, 0.70710677
        %v632 = vmul.f32 %v554, 0.70710677
        %v633 = vmul.f32 %v556, 0.70710677
        %v634 = vmul.f32 %v447, 0.70710677
        %v635 = vmul.f32 %v449, 0.70710677
        %v636 = vmul.f32 %v560, 0.70710677
        %v637 = vmul.f32 %v562, 0.70710677
        %v638 = vmul.f32 %v453, 0.70710677
        %v639 = vmul.f32 %v455, 0.70710677
        %v640 = vmul.f32 %v566, 0.70710677
        %v641 = vmul.f32 %v568, 0.70710677
        %v642 = vmul.f32 %v459, 0.70710677
        %v643 = vmul.f32 %v461, 0.70710677
        %v644 = vmul.f32 %v572, 0.70710677
        %v645 = vmul.f32 %v574, 0.70710677
        %v646 = vmul.f32 %v465, 0.70710677
        %v647 = vmul.f32 %v467, 0.70710677
        %v648 = vmul.f32 %v578, 0.70710677
        %v649 = vmul.f32 %v580, 0.70710677
        %v650 = vmul.f32 %v471, 0.70710677
        %v651 = vmul.f32 %v473, 0.70710677
        %v652 = vmul.f32 %v584, 0.70710677
        %v653 = vmul.f32 %v586, 0.70710677
        %v654 = vmul.f32 %v477, 0.70710677
        %v655 = vmul.f32 %v479, 0.70710677
        %v656 = vmul.f32 %v590, 0.70710677
        %v657 = vmul.f32 %v592, 0.70710677
        %v658 = vand.u32 2147483647, %v626
        %v659 = vand.u32 2147483647, %v627
        %v660 = vand.u32 2147483647, %v628
        %v661 = vand.u32 2147483647, %v629
        %v662 = vand.u32 2147483647, %v630
        %v663 = vand.u32 2147483647, %v631
        %v664 = vand.u32 2147483647, %v632
        %v665 = vand.u32 2147483647, %v633
        %v666 = vand.u32 2147483647, %v634
        %v667 = vand.u32 2147483647, %v635
        %v668 = vand.u32 2147483647, %v636
        %v669 = vand.u32 2147483647, %v637
        %v670 = vand.u32 2147483647, %v638
        %v671 = vand.u32 2147483647, %v639
        %v672 = vand.u32 2147483647, %v640
        %v673 = vand.u32 2147483647, %v641
        %v674 = vand.u32 2147483647, %v642
        %v675 = vand.u32 2147483647, %v643
        %v676 = vand.u32 2147483647, %v644
        %v677 = vand.u32 2147483647, %v645
        %v678 = vand.u32 2147483647, %v646
        %v679 = vand.u32 2147483647, %v647
        %v680 = vand.u32 2147483647, %v648
        %v681 = vand.u32 2147483647, %v649
        %v682 = vand.u32 2147483647, %v650
        %v683 = vand.u32 2147483647, %v651
        %v684 = vand.u32 2147483647, %v652
        %v685 = vand.u32 2147483647, %v653
        %v686 = vand.u32 2147483647, %v654
        %v687 = vand.u32 2147483647, %v655
        %v688 = vand.u32 2147483647, %v656
        %v689 = vand.u32 2147483647, %v657
        %v690 = vmul.f32 %v658, 0.3275911
        %v691 = vmul.f32 %v659, 0.3275911
        %v692 = vmul.f32 %v660, 0.3275911
        %v693 = vmul.f32 %v661, 0.3275911
        %v694 = vmul.f32 %v662, 0.3275911
        %v695 = vmul.f32 %v663, 0.3275911
        %v696 = vmul.f32 %v664, 0.3275911
        %v697 = vmul.f32 %v665, 0.3275911
        %v698 = vmul.f32 %v666, 0.3275911
        %v699 = vmul.f32 %v667, 0.3275911
        %v700 = vmul.f32 %v668, 0.3275911
        %v701 = vmul.f32 %v669, 0.3275911
        %v702 = vmul.f32 %v670, 0.3275911
        %v703 = vmul.f32 %v671, 0.3275911
        %v704 = vmul.f32 %v672, 0.3275911
        %v705 = vmul.f32 %v673, 0.3275911
        %v706 = vmul.f32 %v674, 0.3275911
        %v707 = vmul.f32 %v675, 0.3275911
        %v708 = vmul.f32 %v676, 0.3275911
        %v709 = vmul.f32 %v677, 0.3275911
        %v710 = vmul.f32 %v678, 0.3275911
        %v711 = vmul.f32 %v679, 0.3275911
        %v712 = vmul.f32 %v680, 0.3275911
        %v713 = vmul.f32 %v681, 0.3275911
        %v714 = vmul.f32 %v682, 0.3275911
        %v715 = vmul.f32 %v683, 0.3275911
        %v716 = vmul.f32 %v684, 0.3275911
        %v717 = vmul.f32 %v685, 0.3275911
        %v718 = vmul.f32 %v686, 0.3275911
        %v719 = vmul.f32 %v687, 0.3275911
        %v720 = vmul.f32 %v688, 0.3275911
        %v721 = vmul.f32 %v689, 0.3275911
        %v722 = vadd.f32 %v690, 1.0
        %v723 = vadd.f32 %v691, 1.0
        %v724 = vadd.f32 %v692, 1.0
        %v725 = vadd.f32 %v693, 1.0
        %v726 = vadd.f32 %v694, 1.0
        %v727 = vadd.f32 %v695, 1.0
        %v728 = vadd.f32 %v696, 1.0
        %v729 = vadd.f32 %v697, 1.0
        %v730 = vadd.f32 %v698, 1.0
        %v731 = vadd.f32 %v699, 1.0
        %v732 = vadd.f32 %v700, 1.0
        %v733 = vadd.f32 %v701, 1.0
        %v734 = vadd.f32 %v702, 1.0
        %v735 = vadd.f32 %v703, 1.0
        %v736 = vadd.f32 %v704, 1.0
        %v737 = vadd.f32 %v705, 1.0
        %v738 = vadd.f32 %v706, 1.0
        %v739 = vadd.f32 %v707, 1.0
        %v740 = vadd.f32 %v708, 1.0
        %v741 = vadd.f32 %v709, 1.0
        %v742 = vadd.f32 %v710, 1.0
        %v743 = vadd.f32 %v711, 1.0
        %v744 = vadd.f32 %v712, 1.0
        %v745 = vadd.f32 %v713, 1.0
        %v746 = vadd.f32 %v714, 1.0
        %v747 = vadd.f32 %v715, 1.0
        %v748 = vadd.f32 %v716, 1.0
        %v749 = vadd.f32 %v717, 1.0
        %v750 = vadd.f32 %v718, 1.0
        %v751 = vadd.f32 %v719, 1.0
        %v752 = vadd.f32 %v720, 1.0
        %v753 = vadd.f32 %v721, 1.0
        %v754 = vrcp.pop %v722
        %v755 = vmul.f32 1.0, %v754
        %v756 = vrcp.pop %v723
        %v757 = vmul.f32 1.0, %v756
        %v758 = vrcp.pop %v724
        %v759 = vmul.f32 1.0, %v758
        %v760 = vrcp.pop %v725
        %v761 = vmul.f32 1.0, %v760
        %v762 = vrcp.pop %v726
        %v763 = vmul.f32 1.0, %v762
        %v764 = vrcp.pop %v727
        %v765 = vmul.f32 1.0, %v764
        %v766 = vrcp.pop %v728
        %v767 = vmul.f32 1.0, %v766
        %v768 = vrcp.pop %v729
        %v769 = vmul.f32 1.0, %v768
        %v770 = vrcp.pop %v730
        %v771 = vmul.f32 1.0, %v770
        %v772 = vrcp.pop %v731
        %v773 = vmul.f32 1.0, %v772
        %v774 = vrcp.pop %v732
        %v775 = vmul.f32 1.0, %v774
        %v776 = vrcp.pop %v733
        %v777 = vmul.f32 1.0, %v776
        %v778 = vrcp.pop %v734
        %v779 = vmul.f32 1.0, %v778
        %v780 = vrcp.pop %v735
        %v781 = vmul.f32 1.0, %v780
        %v782 = vrcp.pop %v736
        %v783 = vmul.f32 1.0, %v782
        %v784 = vrcp.pop %v737
        %v785 = vmul.f32 1.0, %v784
        %v786 = vrcp.pop %v738
        %v787 = vmul.f32 1.0, %v786
        %v788 = vrcp.pop %v739
        %v789 = vmul.f32 1.0, %v788
        %v790 = vrcp.pop %v740
        %v791 = vmul.f32 1.0, %v790
        %v792 = vrcp.pop %v741
        %v793 = vmul.f32 1.0, %v792
        %v794 = vrcp.pop %v742
        %v795 = vmul.f32 1.0, %v794
        %v796 = vrcp.pop %v743
        %v797 = vmul.f32 1.0, %v796
        %v798 = vrcp.pop %v744
        %v799 = vmul.f32 1.0, %v798
        %v800 = vrcp.pop %v745
        %v801 = vmul.f32 1.0, %v800
        %v802 = vrcp.pop %v746
        %v803 = vmul.f32 1.0, %v802
        %v804 = vrcp.pop %v747
        %v805 = vmul.f32 1.0, %v804
        %v806 = vrcp.pop %v748
        %v807 = vmul.f32 1.0, %v806
        %v808 = vrcp.pop %v749
        %v809 = vmul.f32 1.0, %v808
        %v810 = vrcp.pop %v750
        %v811 = vmul.f32 1.0, %v810
        %v812 = vrcp.pop %v751
        %v813 = vmul.f32 1.0, %v812
        %v814 = vrcp.pop %v752
        %v815 = vmul.f32 1.0, %v814
        %v816 = vrcp.pop %v753
        %v817 = vmul.f32 1.0, %v816
        %v818 = vmul.f32 %v755, 1.0614054
        %v819 = vmul.f32 %v757, 1.0614054
        %v820 = vmul.f32 %v759, 1.0614054
        %v821 = vmul.f32 %v761, 1.0614054
        %v822 = vmul.f32 %v763, 1.0614054
        %v823 = vmul.f32 %v765, 1.0614054
        %v824 = vmul.f32 %v767, 1.0614054
        %v825 = vmul.f32 %v769, 1.0614054
        %v826 = vmul.f32 %v771, 1.0614054
        %v827 = vmul.f32 %v773, 1.0614054
        %v828 = vmul.f32 %v775, 1.0614054
        %v829 = vmul.f32 %v777, 1.0614054
        %v830 = vmul.f32 %v779, 1.0614054
        %v831 = vmul.f32 %v781, 1.0614054
        %v832 = vmul.f32 %v783, 1.0614054
        %v833 = vmul.f32 %v785, 1.0614054
        %v834 = vmul.f32 %v787, 1.0614054
        %v835 = vmul.f32 %v789, 1.0614054
        %v836 = vmul.f32 %v791, 1.0614054
        %v837 = vmul.f32 %v793, 1.0614054
        %v838 = vmul.f32 %v795, 1.0614054
        %v839 = vmul.f32 %v797, 1.0614054
        %v840 = vmul.f32 %v799, 1.0614054
        %v841 = vmul.f32 %v801, 1.0614054
        %v842 = vmul.f32 %v803, 1.0614054
        %v843 = vmul.f32 %v805, 1.0614054
        %v844 = vmul.f32 %v807, 1.0614054
        %v845 = vmul.f32 %v809, 1.0614054
        %v846 = vmul.f32 %v811, 1.0614054
        %v847 = vmul.f32 %v813, 1.0614054
        %v848 = vmul.f32 %v815, 1.0614054
        %v849 = vmul.f32 %v817, 1.0614054
        %v850 = vsub.f32 %v818, 1.4531521
        %v851 = vsub.f32 %v819, 1.4531521
        %v852 = vsub.f32 %v820, 1.4531521
        %v853 = vsub.f32 %v821, 1.4531521
        %v854 = vsub.f32 %v822, 1.4531521
        %v855 = vsub.f32 %v823, 1.4531521
        %v856 = vsub.f32 %v824, 1.4531521
        %v857 = vsub.f32 %v825, 1.4531521
        %v858 = vsub.f32 %v826, 1.4531521
        %v859 = vsub.f32 %v827, 1.4531521
        %v860 = vsub.f32 %v828, 1.4531521
        %v861 = vsub.f32 %v829, 1.4531521
        %v862 = vsub.f32 %v830, 1.4531521
        %v863 = vsub.f32 %v831, 1.4531521
        %v864 = vsub.f32 %v832, 1.4531521
        %v865 = vsub.f32 %v833, 1.4531521
        %v866 = vsub.f32 %v834, 1.4531521
        %v867 = vsub.f32 %v835, 1.4531521
        %v868 = vsub.f32 %v836, 1.4531521
        %v869 = vsub.f32 %v837, 1.4531521
        %v870 = vsub.f32 %v838, 1.4531521
        %v871 = vsub.f32 %v839, 1.4531521
        %v872 = vsub.f32 %v840, 1.4531521
        %v873 = vsub.f32 %v841, 1.4531521
        %v874 = vsub.f32 %v842, 1.4531521
        %v875 = vsub.f32 %v843, 1.4531521
        %v876 = vsub.f32 %v844, 1.4531521
        %v877 = vsub.f32 %v845, 1.4531521
        %v878 = vsub.f32 %v846, 1.4531521
        %v879 = vsub.f32 %v847, 1.4531521
        %v880 = vsub.f32 %v848, 1.4531521
        %v881 = vsub.f32 %v849, 1.4531521
        %v882 = vmul.f32 %v850, %v755
        %v883 = vmul.f32 %v851, %v757
        %v884 = vmul.f32 %v852, %v759
        %v885 = vmul.f32 %v853, %v761
        %v886 = vmul.f32 %v854, %v763
        %v887 = vmul.f32 %v855, %v765
        %v888 = vmul.f32 %v856, %v767
        %v889 = vmul.f32 %v857, %v769
        %v890 = vmul.f32 %v858, %v771
        %v891 = vmul.f32 %v859, %v773
        %v892 = vmul.f32 %v860, %v775
        %v893 = vmul.f32 %v861, %v777
        %v894 = vmul.f32 %v862, %v779
        %v895 = vmul.f32 %v863, %v781
        %v896 = vmul.f32 %v864, %v783
        %v897 = vmul.f32 %v865, %v785
        %v898 = vmul.f32 %v866, %v787
        %v899 = vmul.f32 %v867, %v789
        %v900 = vmul.f32 %v868, %v791
        %v901 = vmul.f32 %v869, %v793
        %v902 = vmul.f32 %v870, %v795
        %v903 = vmul.f32 %v871, %v797
        %v904 = vmul.f32 %v872, %v799
        %v905 = vmul.f32 %v873, %v801
        %v906 = vmul.f32 %v874, %v803
        %v907 = vmul.f32 %v875, %v805
        %v908 = vmul.f32 %v876, %v807
        %v909 = vmul.f32 %v877, %v809
        %v910 = vmul.f32 %v878, %v811
        %v911 = vmul.f32 %v879, %v813
        %v912 = vmul.f32 %v880, %v815
        %v913 = vmul.f32 %v881, %v817
        %v914 = vadd.f32 %v882, 1.4214138
        %v915 = vadd.f32 %v883, 1.4214138
        %v916 = vadd.f32 %v884, 1.4214138
        %v917 = vadd.f32 %v885, 1.4214138
        %v918 = vadd.f32 %v886, 1.4214138
        %v919 = vadd.f32 %v887, 1.4214138
        %v920 = vadd.f32 %v888, 1.4214138
        %v921 = vadd.f32 %v889, 1.4214138
        %v922 = vadd.f32 %v890, 1.4214138
        %v923 = vadd.f32 %v891, 1.4214138
        %v924 = vadd.f32 %v892, 1.4214138
        %v925 = vadd.f32 %v893, 1.4214138
        %v926 = vadd.f32 %v894, 1.4214138
        %v927 = vadd.f32 %v895, 1.4214138
        %v928 = vadd.f32 %v896, 1.4214138
        %v929 = vadd.f32 %v897, 1.4214138
        %v930 = vadd.f32 %v898, 1.4214138
        %v931 = vadd.f32 %v899, 1.4214138
        %v932 = vadd.f32 %v900, 1.4214138
        %v933 = vadd.f32 %v901, 1.4214138
        %v934 = vadd.f32 %v902, 1.4214138
        %v935 = vadd.f32 %v903, 1.4214138
        %v936 = vadd.f32 %v904, 1.4214138
        %v937 = vadd.f32 %v905, 1.4214138
        %v938 = vadd.f32 %v906, 1.4214138
        %v939 = vadd.f32 %v907, 1.4214138
        %v940 = vadd.f32 %v908, 1.4214138
        %v941 = vadd.f32 %v909, 1.4214138
        %v942 = vadd.f32 %v910, 1.4214138
        %v943 = vadd.f32 %v911, 1.4214138
        %v944 = vadd.f32 %v912, 1.4214138
        %v945 = vadd.f32 %v913, 1.4214138
        %v946 = vmul.f32 %v914, %v755
        %v947 = vmul.f32 %v915, %v757
        %v948 = vmul.f32 %v916, %v759
        %v949 = vmul.f32 %v917, %v761
        %v950 = vmul.f32 %v918, %v763
        %v951 = vmul.f32 %v919, %v765
        %v952 = vmul.f32 %v920, %v767
        %v953 = vmul.f32 %v921, %v769
        %v954 = vmul.f32 %v922, %v771
        %v955 = vmul.f32 %v923, %v773
        %v956 = vmul.f32 %v924, %v775
        %v957 = vmul.f32 %v925, %v777
        %v958 = vmul.f32 %v926, %v779
        %v959 = vmul.f32 %v927, %v781
        %v960 = vmul.f32 %v928, %v783
        %v961 = vmul.f32 %v929, %v785
        %v962 = vmul.f32 %v930, %v787
        %v963 = vmul.f32 %v931, %v789
        %v964 = vmul.f32 %v932, %v791
        %v965 = vmul.f32 %v933, %v793
        %v966 = vmul.f32 %v934, %v795
        %v967 = vmul.f32 %v935, %v797
        %v968 = vmul.f32 %v936, %v799
        %v969 = vmul.f32 %v937, %v801
        %v970 = vmul.f32 %v938, %v803
        %v971 = vmul.f32 %v939, %v805
        %v972 = vmul.f32 %v940, %v807
        %v973 = vmul.f32 %v941, %v809
        %v974 = vmul.f32 %v942, %v811
        %v975 = vmul.f32 %v943, %v813
        %v976 = vmul.f32 %v944, %v815
        %v977 = vmul.f32 %v945, %v817
        %v978 = vsub.f32 %v946, 0.28449672
        %v979 = vsub.f32 %v947, 0.28449672
        %v980 = vsub.f32 %v948, 0.28449672
        %v981 = vsub.f32 %v949, 0.28449672
        %v982 = vsub.f32 %v950, 0.28449672
        %v983 = vsub.f32 %v951, 0.28449672
        %v984 = vsub.f32 %v952, 0.28449672
        %v985 = vsub.f32 %v953, 0.28449672
        %v986 = vsub.f32 %v954, 0.28449672
        %v987 = vsub.f32 %v955, 0.28449672
        %v988 = vsub.f32 %v956, 0.28449672
        %v989 = vsub.f32 %v957, 0.28449672
        %v990 = vsub.f32 %v958, 0.28449672
        %v991 = vsub.f32 %v959, 0.28449672
        %v992 = vsub.f32 %v960, 0.28449672
        %v993 = vsub.f32 %v961, 0.28449672
        %v994 = vsub.f32 %v962, 0.28449672
        %v995 = vsub.f32 %v963, 0.28449672
        %v996 = vsub.f32 %v964, 0.28449672
        %v997 = vsub.f32 %v965, 0.28449672
        %v998 = vsub.f32 %v966, 0.28449672
        %v999 = vsub.f32 %v967, 0.28449672
        %v1000 = vsub.f32 %v968, 0.28449672
        %v1001 = vsub.f32 %v969, 0.28449672
        %v1002 = vsub.f32 %v970, 0.28449672
        %v1003 = vsub.f32 %v971, 0.28449672
        %v1004 = vsub.f32 %v972, 0.28449672
        %v1005 = vsub.f32 %v973, 0.28449672
        %v1006 = vsub.f32 %v974, 0.28449672
        %v1007 = vsub.f32 %v975, 0.28449672
        %v1008 = vsub.f32 %v976, 0.28449672
        %v1009 = vsub.f32 %v977, 0.28449672
        %v1010 = vmul.f32 %v978, %v755
        %v1011 = vmul.f32 %v979, %v757
        %v1012 = vmul.f32 %v980, %v759
        %v1013 = vmul.f32 %v981, %v761
        %v1014 = vmul.f32 %v982, %v763
        %v1015 = vmul.f32 %v983, %v765
        %v1016 = vmul.f32 %v984, %v767
        %v1017 = vmul.f32 %v985, %v769
        %v1018 = vmul.f32 %v986, %v771
        %v1019 = vmul.f32 %v987, %v773
        %v1020 = vmul.f32 %v988, %v775
        %v1021 = vmul.f32 %v989, %v777
        %v1022 = vmul.f32 %v990, %v779
        %v1023 = vmul.f32 %v991, %v781
        %v1024 = vmul.f32 %v992, %v783
        %v1025 = vmul.f32 %v993, %v785
        %v1026 = vmul.f32 %v994, %v787
        %v1027 = vmul.f32 %v995, %v789
        %v1028 = vmul.f32 %v996, %v791
        %v1029 = vmul.f32 %v997, %v793
        %v1030 = vmul.f32 %v998, %v795
        %v1031 = vmul.f32 %v999, %v797
        %v1032 = vmul.f32 %v1000, %v799
        %v1033 = vmul.f32 %v1001, %v801
        %v1034 = vmul.f32 %v1002, %v803
        %v1035 = vmul.f32 %v1003, %v805
        %v1036 = vmul.f32 %v1004, %v807
        %v1037 = vmul.f32 %v1005, %v809
        %v1038 = vmul.f32 %v1006, %v811
        %v1039 = vmul.f32 %v1007, %v813
        %v1040 = vmul.f32 %v1008, %v815
        %v1041 = vmul.f32 %v1009, %v817
        %v1042 = vadd.f32 %v1010, 0.2548296
        %v1043 = vadd.f32 %v1011, 0.2548296
        %v1044 = vadd.f32 %v1012, 0.2548296
        %v1045 = vadd.f32 %v1013, 0.2548296
        %v1046 = vadd.f32 %v1014, 0.2548296
        %v1047 = vadd.f32 %v1015, 0.2548296
        %v1048 = vadd.f32 %v1016, 0.2548296
        %v1049 = vadd.f32 %v1017, 0.2548296
        %v1050 = vadd.f32 %v1018, 0.2548296
        %v1051 = vadd.f32 %v1019, 0.2548296
        %v1052 = vadd.f32 %v1020, 0.2548296
        %v1053 = vadd.f32 %v1021, 0.2548296
        %v1054 = vadd.f32 %v1022, 0.2548296
        %v1055 = vadd.f32 %v1023, 0.2548296
        %v1056 = vadd.f32 %v1024, 0.2548296
        %v1057 = vadd.f32 %v1025, 0.2548296
        %v1058 = vadd.f32 %v1026, 0.2548296
        %v1059 = vadd.f32 %v1027, 0.2548296
        %v1060 = vadd.f32 %v1028, 0.2548296
        %v1061 = vadd.f32 %v1029, 0.2548296
        %v1062 = vadd.f32 %v1030, 0.2548296
        %v1063 = vadd.f32 %v1031, 0.2548296
        %v1064 = vadd.f32 %v1032, 0.2548296
        %v1065 = vadd.f32 %v1033, 0.2548296
        %v1066 = vadd.f32 %v1034, 0.2548296
        %v1067 = vadd.f32 %v1035, 0.2548296
        %v1068 = vadd.f32 %v1036, 0.2548296
        %v1069 = vadd.f32 %v1037, 0.2548296
        %v1070 = vadd.f32 %v1038, 0.2548296
        %v1071 = vadd.f32 %v1039, 0.2548296
        %v1072 = vadd.f32 %v1040, 0.2548296
        %v1073 = vadd.f32 %v1041, 0.2548296
        %v1074 = vmul.f32 %v1042, %v755
        %v1075 = vmul.f32 %v1043, %v757
        %v1076 = vmul.f32 %v1044, %v759
        %v1077 = vmul.f32 %v1045, %v761
        %v1078 = vmul.f32 %v1046, %v763
        %v1079 = vmul.f32 %v1047, %v765
        %v1080 = vmul.f32 %v1048, %v767
        %v1081 = vmul.f32 %v1049, %v769
        %v1082 = vmul.f32 %v1050, %v771
        %v1083 = vmul.f32 %v1051, %v773
        %v1084 = vmul.f32 %v1052, %v775
        %v1085 = vmul.f32 %v1053, %v777
        %v1086 = vmul.f32 %v1054, %v779
        %v1087 = vmul.f32 %v1055, %v781
        %v1088 = vmul.f32 %v1056, %v783
        %v1089 = vmul.f32 %v1057, %v785
        %v1090 = vmul.f32 %v1058, %v787
        %v1091 = vmul.f32 %v1059, %v789
        %v1092 = vmul.f32 %v1060, %v791
        %v1093 = vmul.f32 %v1061, %v793
        %v1094 = vmul.f32 %v1062, %v795
        %v1095 = vmul.f32 %v1063, %v797
        %v1096 = vmul.f32 %v1064, %v799
        %v1097 = vmul.f32 %v1065, %v801
        %v1098 = vmul.f32 %v1066, %v803
        %v1099 = vmul.f32 %v1067, %v805
        %v1100 = vmul.f32 %v1068, %v807
        %v1101 = vmul.f32 %v1069, %v809
        %v1102 = vmul.f32 %v1070, %v811
        %v1103 = vmul.f32 %v1071, %v813
        %v1104 = vmul.f32 %v1072, %v815
        %v1105 = vmul.f32 %v1073, %v817
        %v1106 = vmul.f32 %v658, %v658
        %v1107 = vmul.f32 %v659, %v659
        %v1108 = vmul.f32 %v660, %v660
        %v1109 = vmul.f32 %v661, %v661
        %v1110 = vmul.f32 %v662, %v662
        %v1111 = vmul.f32 %v663, %v663
        %v1112 = vmul.f32 %v664, %v664
        %v1113 = vmul.f32 %v665, %v665
        %v1114 = vmul.f32 %v666, %v666
        %v1115 = vmul.f32 %v667, %v667
        %v1116 = vmul.f32 %v668, %v668
        %v1117 = vmul.f32 %v669, %v669
        %v1118 = vmul.f32 %v670, %v670
        %v1119 = vmul.f32 %v671, %v671
        %v1120 = vmul.f32 %v672, %v672
        %v1121 = vmul.f32 %v673, %v673
        %v1122 = vmul.f32 %v674, %v674
        %v1123 = vmul.f32 %v675, %v675
        %v1124 = vmul.f32 %v676, %v676
        %v1125 = vmul.f32 %v677, %v677
        %v1126 = vmul.f32 %v678, %v678
        %v1127 = vmul.f32 %v679, %v679
        %v1128 = vmul.f32 %v680, %v680
        %v1129 = vmul.f32 %v681, %v681
        %v1130 = vmul.f32 %v682, %v682
        %v1131 = vmul.f32 %v683, %v683
        %v1132 = vmul.f32 %v684, %v684
        %v1133 = vmul.f32 %v685, %v685
        %v1134 = vmul.f32 %v686, %v686
        %v1135 = vmul.f32 %v687, %v687
        %v1136 = vmul.f32 %v688, %v688
        %v1137 = vmul.f32 %v689, %v689
        %v1138 = vsub.f32 0.0, %v1106
        %v1139 = vsub.f32 0.0, %v1107
        %v1140 = vsub.f32 0.0, %v1108
        %v1141 = vsub.f32 0.0, %v1109
        %v1142 = vsub.f32 0.0, %v1110
        %v1143 = vsub.f32 0.0, %v1111
        %v1144 = vsub.f32 0.0, %v1112
        %v1145 = vsub.f32 0.0, %v1113
        %v1146 = vsub.f32 0.0, %v1114
        %v1147 = vsub.f32 0.0, %v1115
        %v1148 = vsub.f32 0.0, %v1116
        %v1149 = vsub.f32 0.0, %v1117
        %v1150 = vsub.f32 0.0, %v1118
        %v1151 = vsub.f32 0.0, %v1119
        %v1152 = vsub.f32 0.0, %v1120
        %v1153 = vsub.f32 0.0, %v1121
        %v1154 = vsub.f32 0.0, %v1122
        %v1155 = vsub.f32 0.0, %v1123
        %v1156 = vsub.f32 0.0, %v1124
        %v1157 = vsub.f32 0.0, %v1125
        %v1158 = vsub.f32 0.0, %v1126
        %v1159 = vsub.f32 0.0, %v1127
        %v1160 = vsub.f32 0.0, %v1128
        %v1161 = vsub.f32 0.0, %v1129
        %v1162 = vsub.f32 0.0, %v1130
        %v1163 = vsub.f32 0.0, %v1131
        %v1164 = vsub.f32 0.0, %v1132
        %v1165 = vsub.f32 0.0, %v1133
        %v1166 = vsub.f32 0.0, %v1134
        %v1167 = vsub.f32 0.0, %v1135
        %v1168 = vsub.f32 0.0, %v1136
        %v1169 = vsub.f32 0.0, %v1137
        %v1170 = vmul.f32 %v1138, 1.442695
        %v1171 = vpow.pop %v1170
        %v1172 = vmul.f32 %v1139, 1.442695
        %v1173 = vpow.pop %v1172
        %v1174 = vmul.f32 %v1140, 1.442695
        %v1175 = vpow.pop %v1174
        %v1176 = vmul.f32 %v1141, 1.442695
        %v1177 = vpow.pop %v1176
        %v1178 = vmul.f32 %v1142, 1.442695
        %v1179 = vpow.pop %v1178
        %v1180 = vmul.f32 %v1143, 1.442695
        %v1181 = vpow.pop %v1180
        %v1182 = vmul.f32 %v1144, 1.442695
        %v1183 = vpow.pop %v1182
        %v1184 = vmul.f32 %v1145, 1.442695
        %v1185 = vpow.pop %v1184
        %v1186 = vmul.f32 %v1146, 1.442695
        %v1187 = vpow.pop %v1186
        %v1188 = vmul.f32 %v1147, 1.442695
        %v1189 = vpow.pop %v1188
        %v1190 = vmul.f32 %v1148, 1.442695
        %v1191 = vpow.pop %v1190
        %v1192 = vmul.f32 %v1149, 1.442695
        %v1193 = vpow.pop %v1192
        %v1194 = vmul.f32 %v1150, 1.442695
        %v1195 = vpow.pop %v1194
        %v1196 = vmul.f32 %v1151, 1.442695
        %v1197 = vpow.pop %v1196
        %v1198 = vmul.f32 %v1152, 1.442695
        %v1199 = vpow.pop %v1198
        %v1200 = vmul.f32 %v1153, 1.442695
        %v1201 = vpow.pop %v1200
        %v1202 = vmul.f32 %v1154, 1.442695
        %v1203 = vpow.pop %v1202
        %v1204 = vmul.f32 %v1155, 1.442695
        %v1205 = vpow.pop %v1204
        %v1206 = vmul.f32 %v1156, 1.442695
        %v1207 = vpow.pop %v1206
        %v1208 = vmul.f32 %v1157, 1.442695
        %v1209 = vpow.pop %v1208
        %v1210 = vmul.f32 %v1158, 1.442695
        %v1211 = vpow.pop %v1210
        %v1212 = vmul.f32 %v1159, 1.442695
        %v1213 = vpow.pop %v1212
        %v1214 = vmul.f32 %v1160, 1.442695
        %v1215 = vpow.pop %v1214
        %v1216 = vmul.f32 %v1161, 1.442695
        %v1217 = vpow.pop %v1216
        %v1218 = vmul.f32 %v1162, 1.442695
        %v1219 = vpow.pop %v1218
        %v1220 = vmul.f32 %v1163, 1.442695
        %v1221 = vpow.pop %v1220
        %v1222 = vmul.f32 %v1164, 1.442695
        %v1223 = vpow.pop %v1222
        %v1224 = vmul.f32 %v1165, 1.442695
        %v1225 = vpow.pop %v1224
        %v1226 = vmul.f32 %v1166, 1.442695
        %v1227 = vpow.pop %v1226
        %v1228 = vmul.f32 %v1167, 1.442695
        %v1229 = vpow.pop %v1228
        %v1230 = vmul.f32 %v1168, 1.442695
        %v1231 = vpow.pop %v1230
        %v1232 = vmul.f32 %v1169, 1.442695
        %v1233 = vpow.pop %v1232
        %v1234 = vmul.f32 %v1074, %v1171
        %v1235 = vmul.f32 %v1075, %v1173
        %v1236 = vmul.f32 %v1076, %v1175
        %v1237 = vmul.f32 %v1077, %v1177
        %v1238 = vmul.f32 %v1078, %v1179
        %v1239 = vmul.f32 %v1079, %v1181
        %v1240 = vmul.f32 %v1080, %v1183
        %v1241 = vmul.f32 %v1081, %v1185
        %v1242 = vmul.f32 %v1082, %v1187
        %v1243 = vmul.f32 %v1083, %v1189
        %v1244 = vmul.f32 %v1084, %v1191
        %v1245 = vmul.f32 %v1085, %v1193
        %v1246 = vmul.f32 %v1086, %v1195
        %v1247 = vmul.f32 %v1087, %v1197
        %v1248 = vmul.f32 %v1088, %v1199
        %v1249 = vmul.f32 %v1089, %v1201
        %v1250 = vmul.f32 %v1090, %v1203
        %v1251 = vmul.f32 %v1091, %v1205
        %v1252 = vmul.f32 %v1092, %v1207
        %v1253 = vmul.f32 %v1093, %v1209
        %v1254 = vmul.f32 %v1094, %v1211
        %v1255 = vmul.f32 %v1095, %v1213
        %v1256 = vmul.f32 %v1096, %v1215
        %v1257 = vmul.f32 %v1097, %v1217
        %v1258 = vmul.f32 %v1098, %v1219
        %v1259 = vmul.f32 %v1099, %v1221
        %v1260 = vmul.f32 %v1100, %v1223
        %v1261 = vmul.f32 %v1101, %v1225
        %v1262 = vmul.f32 %v1102, %v1227
        %v1263 = vmul.f32 %v1103, %v1229
        %v1264 = vmul.f32 %v1104, %v1231
        %v1265 = vmul.f32 %v1105, %v1233
        %v1266 = vsub.f32 1.0, %v1234
        %v1267 = vsub.f32 1.0, %v1235
        %v1268 = vsub.f32 1.0, %v1236
        %v1269 = vsub.f32 1.0, %v1237
        %v1270 = vsub.f32 1.0, %v1238
        %v1271 = vsub.f32 1.0, %v1239
        %v1272 = vsub.f32 1.0, %v1240
        %v1273 = vsub.f32 1.0, %v1241
        %v1274 = vsub.f32 1.0, %v1242
        %v1275 = vsub.f32 1.0, %v1243
        %v1276 = vsub.f32 1.0, %v1244
        %v1277 = vsub.f32 1.0, %v1245
        %v1278 = vsub.f32 1.0, %v1246
        %v1279 = vsub.f32 1.0, %v1247
        %v1280 = vsub.f32 1.0, %v1248
        %v1281 = vsub.f32 1.0, %v1249
        %v1282 = vsub.f32 1.0, %v1250
        %v1283 = vsub.f32 1.0, %v1251
        %v1284 = vsub.f32 1.0, %v1252
        %v1285 = vsub.f32 1.0, %v1253
        %v1286 = vsub.f32 1.0, %v1254
        %v1287 = vsub.f32 1.0, %v1255
        %v1288 = vsub.f32 1.0, %v1256
        %v1289 = vsub.f32 1.0, %v1257
        %v1290 = vsub.f32 1.0, %v1258
        %v1291 = vsub.f32 1.0, %v1259
        %v1292 = vsub.f32 1.0, %v1260
        %v1293 = vsub.f32 1.0, %v1261
        %v1294 = vsub.f32 1.0, %v1262
        %v1295 = vsub.f32 1.0, %v1263
        %v1296 = vsub.f32 1.0, %v1264
        %v1297 = vsub.f32 1.0, %v1265
        %vm1298 = vcmp.lt.f32.partialorder %v626, 0.0
        %vm1299 = vcmp.lt.f32.partialorder %v627, 0.0
        %vm1300 = vcmp.lt.f32.partialorder %v628, 0.0
        %vm1301 = vcmp.lt.f32.partialorder %v629, 0.0
        %vm1302 = vcmp.lt.f32.partialorder %v630, 0.0
        %vm1303 = vcmp.lt.f32.partialorder %v631, 0.0
        %vm1304 = vcmp.lt.f32.partialorder %v632, 0.0
        %vm1305 = vcmp.lt.f32.partialorder %v633, 0.0
        %vm1306 = vcmp.lt.f32.partialorder %v634, 0.0
        %vm1307 = vcmp.lt.f32.partialorder %v635, 0.0
        %vm1308 = vcmp.lt.f32.partialorder %v636, 0.0
        %vm1309 = vcmp.lt.f32.partialorder %v637, 0.0
        %vm1310 = vcmp.lt.f32.partialorder %v638, 0.0
        %vm1311 = vcmp.lt.f32.partialorder %v639, 0.0
        %vm1312 = vcmp.lt.f32.partialorder %v640, 0.0
        %vm1313 = vcmp.lt.f32.partialorder %v641, 0.0
        %vm1314 = vcmp.lt.f32.partialorder %v642, 0.0
        %vm1315 = vcmp.lt.f32.partialorder %v643, 0.0
        %vm1316 = vcmp.lt.f32.partialorder %v644, 0.0
        %vm1317 = vcmp.lt.f32.partialorder %v645, 0.0
        %vm1318 = vcmp.lt.f32.partialorder %v646, 0.0
        %vm1319 = vcmp.lt.f32.partialorder %v647, 0.0
        %vm1320 = vcmp.lt.f32.partialorder %v648, 0.0
        %vm1321 = vcmp.lt.f32.partialorder %v649, 0.0
        %vm1322 = vcmp.lt.f32.partialorder %v650, 0.0
        %vm1323 = vcmp.lt.f32.partialorder %v651, 0.0
        %vm1324 = vcmp.lt.f32.partialorder %v652, 0.0
        %vm1325 = vcmp.lt.f32.partialorder %v653, 0.0
        %vm1326 = vcmp.lt.f32.partialorder %v654, 0.0
        %vm1327 = vcmp.lt.f32.partialorder %v655, 0.0
        %vm1328 = vcmp.lt.f32.partialorder %v656, 0.0
        %vm1329 = vcmp.lt.f32.partialorder %v657, 0.0
        %v1330 = vsub.f32 0.0, %v1266
        %v1331 = vsub.f32 0.0, %v1267
        %v1332 = vsub.f32 0.0, %v1268
        %v1333 = vsub.f32 0.0, %v1269
        %v1334 = vsub.f32 0.0, %v1270
        %v1335 = vsub.f32 0.0, %v1271
        %v1336 = vsub.f32 0.0, %v1272
        %v1337 = vsub.f32 0.0, %v1273
        %v1338 = vsub.f32 0.0, %v1274
        %v1339 = vsub.f32 0.0, %v1275
        %v1340 = vsub.f32 0.0, %v1276
        %v1341 = vsub.f32 0.0, %v1277
        %v1342 = vsub.f32 0.0, %v1278
        %v1343 = vsub.f32 0.0, %v1279
        %v1344 = vsub.f32 0.0, %v1280
        %v1345 = vsub.f32 0.0, %v1281
        %v1346 = vsub.f32 0.0, %v1282
        %v1347 = vsub.f32 0.0, %v1283
        %v1348 = vsub.f32 0.0, %v1284
        %v1349 = vsub.f32 0.0, %v1285
        %v1350 = vsub.f32 0.0, %v1286
        %v1351 = vsub.f32 0.0, %v1287
        %v1352 = vsub.f32 0.0, %v1288
        %v1353 = vsub.f32 0.0, %v1289
        %v1354 = vsub.f32 0.0, %v1290
        %v1355 = vsub.f32 0.0, %v1291
        %v1356 = vsub.f32 0.0, %v1292
        %v1357 = vsub.f32 0.0, %v1293
        %v1358 = vsub.f32 0.0, %v1294
        %v1359 = vsub.f32 0.0, %v1295
        %v1360 = vsub.f32 0.0, %v1296
        %v1361 = vsub.f32 0.0, %v1297
        %v1362 = vsel %vm1298, %v1330, %v1266
        %v1363 = vsel %vm1299, %v1331, %v1267
        %v1364 = vsel %vm1300, %v1332, %v1268
        %v1365 = vsel %vm1301, %v1333, %v1269
        %v1366 = vsel %vm1302, %v1334, %v1270
        %v1367 = vsel %vm1303, %v1335, %v1271
        %v1368 = vsel %vm1304, %v1336, %v1272
        %v1369 = vsel %vm1305, %v1337, %v1273
        %v1370 = vsel %vm1306, %v1338, %v1274
        %v1371 = vsel %vm1307, %v1339, %v1275
        %v1372 = vsel %vm1308, %v1340, %v1276
        %v1373 = vsel %vm1309, %v1341, %v1277
        %v1374 = vsel %vm1310, %v1342, %v1278
        %v1375 = vsel %vm1311, %v1343, %v1279
        %v1376 = vsel %vm1312, %v1344, %v1280
        %v1377 = vsel %vm1313, %v1345, %v1281
        %v1378 = vsel %vm1314, %v1346, %v1282
        %v1379 = vsel %vm1315, %v1347, %v1283
        %v1380 = vsel %vm1316, %v1348, %v1284
        %v1381 = vsel %vm1317, %v1349, %v1285
        %v1382 = vsel %vm1318, %v1350, %v1286
        %v1383 = vsel %vm1319, %v1351, %v1287
        %v1384 = vsel %vm1320, %v1352, %v1288
        %v1385 = vsel %vm1321, %v1353, %v1289
        %v1386 = vsel %vm1322, %v1354, %v1290
        %v1387 = vsel %vm1323, %v1355, %v1291
        %v1388 = vsel %vm1324, %v1356, %v1292
        %v1389 = vsel %vm1325, %v1357, %v1293
        %v1390 = vsel %vm1326, %v1358, %v1294
        %v1391 = vsel %vm1327, %v1359, %v1295
        %v1392 = vsel %vm1328, %v1360, %v1296
        %v1393 = vsel %vm1329, %v1361, %v1297
        %v1394 = vadd.f32 %v1362, 1.0
        %v1395 = vadd.f32 %v1363, 1.0
        %v1396 = vadd.f32 %v1364, 1.0
        %v1397 = vadd.f32 %v1365, 1.0
        %v1398 = vadd.f32 %v1366, 1.0
        %v1399 = vadd.f32 %v1367, 1.0
        %v1400 = vadd.f32 %v1368, 1.0
        %v1401 = vadd.f32 %v1369, 1.0
        %v1402 = vadd.f32 %v1370, 1.0
        %v1403 = vadd.f32 %v1371, 1.0
        %v1404 = vadd.f32 %v1372, 1.0
        %v1405 = vadd.f32 %v1373, 1.0
        %v1406 = vadd.f32 %v1374, 1.0
        %v1407 = vadd.f32 %v1375, 1.0
        %v1408 = vadd.f32 %v1376, 1.0
        %v1409 = vadd.f32 %v1377, 1.0
        %v1410 = vadd.f32 %v1378, 1.0
        %v1411 = vadd.f32 %v1379, 1.0
        %v1412 = vadd.f32 %v1380, 1.0
        %v1413 = vadd.f32 %v1381, 1.0
        %v1414 = vadd.f32 %v1382, 1.0
        %v1415 = vadd.f32 %v1383, 1.0
        %v1416 = vadd.f32 %v1384, 1.0
        %v1417 = vadd.f32 %v1385, 1.0
        %v1418 = vadd.f32 %v1386, 1.0
        %v1419 = vadd.f32 %v1387, 1.0
        %v1420 = vadd.f32 %v1388, 1.0
        %v1421 = vadd.f32 %v1389, 1.0
        %v1422 = vadd.f32 %v1390, 1.0
        %v1423 = vadd.f32 %v1391, 1.0
        %v1424 = vadd.f32 %v1392, 1.0
        %v1425 = vadd.f32 %v1393, 1.0
        %v1426 = vmul.f32 %v594, %v1394
        %v1427 = vmul.f32 %v595, %v1395
        %v1428 = vmul.f32 %v596, %v1396
        %v1429 = vmul.f32 %v597, %v1397
        %v1430 = vmul.f32 %v598, %v1398
        %v1431 = vmul.f32 %v599, %v1399
        %v1432 = vmul.f32 %v600, %v1400
        %v1433 = vmul.f32 %v601, %v1401
        %v1434 = vmul.f32 %v602, %v1402
        %v1435 = vmul.f32 %v603, %v1403
        %v1436 = vmul.f32 %v604, %v1404
        %v1437 = vmul.f32 %v605, %v1405
        %v1438 = vmul.f32 %v606, %v1406
        %v1439 = vmul.f32 %v607, %v1407
        %v1440 = vmul.f32 %v608, %v1408
        %v1441 = vmul.f32 %v609, %v1409
        %v1442 = vmul.f32 %v610, %v1410
        %v1443 = vmul.f32 %v611, %v1411
        %v1444 = vmul.f32 %v612, %v1412
        %v1445 = vmul.f32 %v613, %v1413
        %v1446 = vmul.f32 %v614, %v1414
        %v1447 = vmul.f32 %v615, %v1415
        %v1448 = vmul.f32 %v616, %v1416
        %v1449 = vmul.f32 %v617, %v1417
        %v1450 = vmul.f32 %v618, %v1418
        %v1451 = vmul.f32 %v619, %v1419
        %v1452 = vmul.f32 %v620, %v1420
        %v1453 = vmul.f32 %v621, %v1421
        %v1454 = vmul.f32 %v622, %v1422
        %v1455 = vmul.f32 %v623, %v1423
        %v1456 = vmul.f32 %v624, %v1424
        %v1457 = vmul.f32 %v625, %v1425
        %v1458 = vld [vmem:[#allocation7] sm:$0xff]
        %v1459 = vld [vmem:[#allocation7 + $0x8] sm:$0xff]
        %v1460 = vld [vmem:[#allocation7 + $0x10] sm:$0xff]
        %v1461 = vld [vmem:[#allocation7 + $0x18] sm:$0xff]
        %v1462 = vld [vmem:[#allocation7 + $0x20] sm:$0xff]
        %v1463 = vld [vmem:[#allocation7 + $0x28] sm:$0xff]
        %v1464 = vld [vmem:[#allocation7 + $0x30] sm:$0xff]
        %v1465 = vld [vmem:[#allocation7 + $0x38] sm:$0xff]
        %v1466 = vld [vmem:[#allocation7 + $0x40] sm:$0xff]
        %v1467 = vld [vmem:[#allocation7 + $0x48] sm:$0xff]
        %v1468 = vld [vmem:[#allocation7 + $0x50] sm:$0xff]
        %v1469 = vld [vmem:[#allocation7 + $0x58] sm:$0xff]
        %v1470 = vld [vmem:[#allocation7 + $0x60] sm:$0xff]
        %v1471 = vld [vmem:[#allocation7 + $0x68] sm:$0xff]
        %v1472 = vld [vmem:[#allocation7 + $0x70] sm:$0xff]
        %v1473 = vld [vmem:[#allocation7 + $0x78] sm:$0xff]
        %v1474 = vld [vmem:[#allocation7 + $0x80] sm:$0xff]
        %v1475 = vld [vmem:[#allocation7 + $0x88] sm:$0xff]
        %v1476 = vld [vmem:[#allocation7 + $0x90] sm:$0xff]
        %v1477 = vld [vmem:[#allocation7 + $0x98] sm:$0xff]
        %v1478 = vld [vmem:[#allocation7 + $0xa0] sm:$0xff]
        %v1479 = vld [vmem:[#allocation7 + $0xa8] sm:$0xff]
        %v1480 = vld [vmem:[#allocation7 + $0xb0] sm:$0xff]
        %v1481 = vld [vmem:[#allocation7 + $0xb8] sm:$0xff]
        %v1482 = vld [vmem:[#allocation7 + $0xc0] sm:$0xff]
        %v1483 = vld [vmem:[#allocation7 + $0xc8] sm:$0xff]
        %v1484 = vld [vmem:[#allocation7 + $0xd0] sm:$0xff]
        %v1485 = vld [vmem:[#allocation7 + $0xd8] sm:$0xff]
        %v1486 = vld [vmem:[#allocation7 + $0xe0] sm:$0xff]
        %v1487 = vld [vmem:[#allocation7 + $0xe8] sm:$0xff]
        %v1488 = vld [vmem:[#allocation7 + $0xf0] sm:$0xff]
        %v1489 = vld [vmem:[#allocation7 + $0xf8] sm:$0xff]
        %v1490 = vld [vmem:[#allocation7 + $0x100] sm:$0xff]
        %v1491 = vld [vmem:[#allocation7 + $0x108] sm:$0xff]
        %v1492 = vld [vmem:[#allocation7 + $0x110] sm:$0xff]
        %v1493 = vld [vmem:[#allocation7 + $0x118] sm:$0xff]
        %v1494 = vld [vmem:[#allocation7 + $0x120] sm:$0xff]
        %v1495 = vld [vmem:[#allocation7 + $0x128] sm:$0xff]
        %v1496 = vld [vmem:[#allocation7 + $0x130] sm:$0xff]
        %v1497 = vld [vmem:[#allocation7 + $0x138] sm:$0xff]
        %v1498 = vld [vmem:[#allocation7 + $0x140] sm:$0xff]
        %v1499 = vld [vmem:[#allocation7 + $0x148] sm:$0xff]
        %v1500 = vld [vmem:[#allocation7 + $0x150] sm:$0xff]
        %v1501 = vld [vmem:[#allocation7 + $0x158] sm:$0xff]
        %v1502 = vld [vmem:[#allocation7 + $0x160] sm:$0xff]
        %v1503 = vld [vmem:[#allocation7 + $0x168] sm:$0xff]
        %v1504 = vld [vmem:[#allocation7 + $0x170] sm:$0xff]
        %v1505 = vld [vmem:[#allocation7 + $0x178] sm:$0xff]
        %v1506 = vld [vmem:[#allocation7 + $0x180] sm:$0xff]
        %v1507 = vld [vmem:[#allocation7 + $0x188] sm:$0xff]
        %v1508 = vld [vmem:[#allocation7 + $0x190] sm:$0xff]
        %v1509 = vld [vmem:[#allocation7 + $0x198] sm:$0xff]
        %v1510 = vld [vmem:[#allocation7 + $0x1a0] sm:$0xff]
        %v1511 = vld [vmem:[#allocation7 + $0x1a8] sm:$0xff]
        %v1512 = vld [vmem:[#allocation7 + $0x1b0] sm:$0xff]
        %v1513 = vld [vmem:[#allocation7 + $0x1b8] sm:$0xff]
        %v1514 = vld [vmem:[#allocation7 + $0x1c0] sm:$0xff]
        %v1515 = vld [vmem:[#allocation7 + $0x1c8] sm:$0xff]
        %v1516 = vld [vmem:[#allocation7 + $0x1d0] sm:$0xff]
        %v1517 = vld [vmem:[#allocation7 + $0x1d8] sm:$0xff]
        %v1518 = vld [vmem:[#allocation7 + $0x1e0] sm:$0xff]
        %v1519 = vld [vmem:[#allocation7 + $0x1e8] sm:$0xff]
        %v1520 = vld [vmem:[#allocation7 + $0x1f0] sm:$0xff]
        %v1521 = vld [vmem:[#allocation7 + $0x1f8] sm:$0xff]
        %v1522 = vld [vmem:[%s4] sm:$0x1]
        %v1524 = vlaneseq
        %v1525 = vshrl.u32 %v1524, 7
        %v1526 = vsub.s32 0, %v1525
        %v1527 = vrot.slane %v1522, %v1526
        %1529 = vmatprep.subr.mxu0 0.0
        %1530 = vmatpush1.msra.mxu0 %v1473
        %1531 = vmatprep.subr.mxu0 0.0
        %1532 = vmatpush1.msra.mxu0 %v1472
        %1533 = vmatprep.subr.mxu0 0.0
        %1534 = vmatpush1.msra.mxu0 %v1471
        %1535 = vmatprep.subr.mxu0 0.0
        %1536 = vmatpush1.msra.mxu0 %v1470
        %1537 = vmatprep.subr.mxu0 0.0
        %1538 = vmatpush1.msra.mxu0 %v1469
        %1539 = vmatprep.subr.mxu0 0.0
        %1540 = vmatpush1.msra.mxu0 %v1468
        %1541 = vmatprep.subr.mxu0 0.0
        %1542 = vmatpush1.msra.mxu0 %v1467
        %1543 = vmatprep.subr.mxu0 0.0
        %1544 = vmatpush1.msra.mxu0 %v1466
        %1545 = vmatprep.subr.mxu0 0.0
        %1546 = vmatpush1.msra.mxu0 %v1465
        %1547 = vmatprep.subr.mxu0 0.0
        %1548 = vmatpush1.msra.mxu0 %v1464
        %1549 = vmatprep.subr.mxu0 0.0
        %1550 = vmatpush1.msra.mxu0 %v1463
        %1551 = vmatprep.subr.mxu0 0.0
        %1552 = vmatpush1.msra.mxu0 %v1462
        %1553 = vmatprep.subr.mxu0 0.0
        %1554 = vmatpush1.msra.mxu0 %v1461
        %1555 = vmatprep.subr.mxu0 0.0
        %1556 = vmatpush1.msra.mxu0 %v1460
        %1557 = vmatprep.subr.mxu0 0.0
        %1558 = vmatpush1.msra.mxu0 %v1459
        %1559 = vmatprep.subr.mxu0 0.0
        %1560 = vmatpush1.msra.mxu0 %v1458
        %1561 = vmatprep.subr.mxu0 0.0
        %1562 = vmatpush2.msra.mxu0 %v1489
        %1563 = vmatprep.subr.mxu0 0.0
        %1564 = vmatpush2.msra.mxu0 %v1488
        %1565 = vmatprep.subr.mxu0 0.0
        %1566 = vmatpush2.msra.mxu0 %v1487
        %1567 = vmatprep.subr.mxu0 0.0
        %1568 = vmatpush2.msra.mxu0 %v1486
        %1569 = vmatprep.subr.mxu0 0.0
        %1570 = vmatpush2.msra.mxu0 %v1485
        %1571 = vmatprep.subr.mxu0 0.0
        %1572 = vmatpush2.msra.mxu0 %v1484
        %1573 = vmatprep.subr.mxu0 0.0
        %1574 = vmatpush2.msra.mxu0 %v1483
        %1575 = vmatprep.subr.mxu0 0.0
        %1576 = vmatpush2.msra.mxu0 %v1482
        %1577 = vmatprep.subr.mxu0 0.0
        %1578 = vmatpush2.msra.mxu0 %v1481
        %1579 = vmatprep.subr.mxu0 0.0
        %1580 = vmatpush2.msra.mxu0 %v1480
        %1581 = vmatprep.subr.mxu0 0.0
        %1582 = vmatpush2.msra.mxu0 %v1479
        %1583 = vmatprep.subr.mxu0 0.0
        %1584 = vmatpush2.msra.mxu0 %v1478
        %1585 = vmatprep.subr.mxu0 0.0
        %1586 = vmatpush2.msra.mxu0 %v1477
        %1587 = vmatprep.subr.mxu0 0.0
        %1588 = vmatpush2.msra.mxu0 %v1476
        %1589 = vmatprep.subr.mxu0 0.0
        %1590 = vmatpush2.msra.mxu0 %v1475
        %1591 = vmatprep.subr.mxu0 0.0
        %1592 = vmatpush2.msra.mxu0 %v1474
        %1593 = vmatprep.mubr.f32.mxu0 %v1427
        %1594 = vmatmul.mubr.f32.gmra.mxu0 %v1426
        %v1595 = vpop.f32.mrf.mxu0
        %v1596 = vadd.f32 %v1527, %v1595
        %v1597 = vpop.f32.mrf.mxu0
        %1598 = vmatprep.mubr.f32.mxu0 %v1431
        %1599 = vmatmul.mubr.f32.gmra.mxu0 %v1430
        %v1600 = vpop.f32.mrf.mxu0
        %v1601 = vadd.f32 %v1527, %v1600
        %v1602 = vpop.f32.mrf.mxu0
        %1603 = vmatprep.mubr.f32.mxu0 %v1435
        %1604 = vmatmul.mubr.f32.gmra.mxu0 %v1434
        %v1605 = vpop.f32.mrf.mxu0
        %v1606 = vadd.f32 %v1527, %v1605
        %v1607 = vpop.f32.mrf.mxu0
        %1608 = vmatprep.mubr.f32.mxu0 %v1439
        %1609 = vmatmul.mubr.f32.gmra.mxu0 %v1438
        %v1610 = vpop.f32.mrf.mxu0
        %v1611 = vadd.f32 %v1527, %v1610
        %v1612 = vpop.f32.mrf.mxu0
        %1613 = vmatprep.mubr.f32.mxu0 %v1443
        %1614 = vmatmul.mubr.f32.gmra.mxu0 %v1442
        %v1615 = vpop.f32.mrf.mxu0
        %v1616 = vadd.f32 %v1527, %v1615
        %v1617 = vpop.f32.mrf.mxu0
        %1618 = vmatprep.mubr.f32.mxu0 %v1447
        %1619 = vmatmul.mubr.f32.gmra.mxu0 %v1446
        %v1620 = vpop.f32.mrf.mxu0
        %v1621 = vadd.f32 %v1527, %v1620
        %v1622 = vpop.f32.mrf.mxu0
        %1623 = vmatprep.mubr.f32.mxu0 %v1451
        %1624 = vmatmul.mubr.f32.gmra.mxu0 %v1450
        %v1625 = vpop.f32.mrf.mxu0
        %v1626 = vadd.f32 %v1527, %v1625
        %v1627 = vpop.f32.mrf.mxu0
        %1628 = vmatprep.mubr.f32.mxu0 %v1455
        %1629 = vmatmul.mubr.f32.gmra.mxu0 %v1454
        %v1630 = vpop.f32.mrf.mxu0
        %v1631 = vadd.f32 %v1527, %v1630
        %v1632 = vpop.f32.mrf.mxu0
        %1633 = vdwg.mxu0
        %1634 = vmatprep.subr.mxu0 0.0
        %1635 = vmatpush1.msra.mxu0 %v1505
        %1636 = vmatprep.subr.mxu0 0.0
        %1637 = vmatpush1.msra.mxu0 %v1504
        %1638 = vmatprep.subr.mxu0 0.0
        %1639 = vmatpush1.msra.mxu0 %v1503
        %1640 = vmatprep.subr.mxu0 0.0
        %1641 = vmatpush1.msra.mxu0 %v1502
        %1642 = vmatprep.subr.mxu0 0.0
        %1643 = vmatpush1.msra.mxu0 %v1501
        %1644 = vmatprep.subr.mxu0 0.0
        %1645 = vmatpush1.msra.mxu0 %v1500
        %1646 = vmatprep.subr.mxu0 0.0
        %1647 = vmatpush1.msra.mxu0 %v1499
        %1648 = vmatprep.subr.mxu0 0.0
        %1649 = vmatpush1.msra.mxu0 %v1498
        %1650 = vmatprep.subr.mxu0 0.0
        %1651 = vmatpush1.msra.mxu0 %v1497
        %1652 = vmatprep.subr.mxu0 0.0
        %1653 = vmatpush1.msra.mxu0 %v1496
        %1654 = vmatprep.subr.mxu0 0.0
        %1655 = vmatpush1.msra.mxu0 %v1495
        %1656 = vmatprep.subr.mxu0 0.0
        %1657 = vmatpush1.msra.mxu0 %v1494
        %1658 = vmatprep.subr.mxu0 0.0
        %1659 = vmatpush1.msra.mxu0 %v1493
        %1660 = vmatprep.subr.mxu0 0.0
        %1661 = vmatpush1.msra.mxu0 %v1492
        %1662 = vmatprep.subr.mxu0 0.0
        %1663 = vmatpush1.msra.mxu0 %v1491
        %1664 = vmatprep.subr.mxu0 0.0
        %1665 = vmatpush1.msra.mxu0 %v1490
        %1666 = vmatprep.subr.mxu0 0.0
        %1667 = vmatpush2.msra.mxu0 %v1521
        %1668 = vmatprep.subr.mxu0 0.0
        %1669 = vmatpush2.msra.mxu0 %v1520
        %1670 = vmatprep.subr.mxu0 0.0
        %1671 = vmatpush2.msra.mxu0 %v1519
        %1672 = vmatprep.subr.mxu0 0.0
        %1673 = vmatpush2.msra.mxu0 %v1518
        %1674 = vmatprep.subr.mxu0 0.0
        %1675 = vmatpush2.msra.mxu0 %v1517
        %1676 = vmatprep.subr.mxu0 0.0
        %1677 = vmatpush2.msra.mxu0 %v1516
        %1678 = vmatprep.subr.mxu0 0.0
        %1679 = vmatpush2.msra.mxu0 %v1515
        %1680 = vmatprep.subr.mxu0 0.0
        %1681 = vmatpush2.msra.mxu0 %v1514
        %1682 = vmatprep.subr.mxu0 0.0
        %1683 = vmatpush2.msra.mxu0 %v1513
        %1684 = vmatprep.subr.mxu0 0.0
        %1685 = vmatpush2.msra.mxu0 %v1512
        %1686 = vmatprep.subr.mxu0 0.0
        %1687 = vmatpush2.msra.mxu0 %v1511
        %1688 = vmatprep.subr.mxu0 0.0
        %1689 = vmatpush2.msra.mxu0 %v1510
        %1690 = vmatprep.subr.mxu0 0.0
        %1691 = vmatpush2.msra.mxu0 %v1509
        %1692 = vmatprep.subr.mxu0 0.0
        %1693 = vmatpush2.msra.mxu0 %v1508
        %1694 = vmatprep.subr.mxu0 0.0
        %1695 = vmatpush2.msra.mxu0 %v1507
        %1696 = vmatprep.subr.mxu0 0.0
        %1697 = vmatpush2.msra.mxu0 %v1506
        %1698 = vmatprep.mubr.f32.mxu0 %v1429
        %1699 = vmatmul.mubr.f32.gmra.mxu0 %v1428
        %v1700 = vpop.f32.mrf.mxu0
        %v1701 = vadd.f32 %v1596, %v1700
        %v1702 = vpop.f32.mrf.mxu0
        %1703 = vmatprep.mubr.f32.mxu0 %v1433
        %1704 = vmatmul.mubr.f32.gmra.mxu0 %v1432
        %v1705 = vpop.f32.mrf.mxu0
        %v1706 = vadd.f32 %v1601, %v1705
        %v1707 = vpop.f32.mrf.mxu0
        %1708 = vmatprep.mubr.f32.mxu0 %v1437
        %1709 = vmatmul.mubr.f32.gmra.mxu0 %v1436
        %v1710 = vpop.f32.mrf.mxu0
        %v1711 = vadd.f32 %v1606, %v1710
        %v1712 = vpop.f32.mrf.mxu0
        %1713 = vmatprep.mubr.f32.mxu0 %v1441
        %1714 = vmatmul.mubr.f32.gmra.mxu0 %v1440
        %v1715 = vpop.f32.mrf.mxu0
        %v1716 = vadd.f32 %v1611, %v1715
        %v1717 = vpop.f32.mrf.mxu0
        %1718 = vmatprep.mubr.f32.mxu0 %v1445
        %1719 = vmatmul.mubr.f32.gmra.mxu0 %v1444
        %v1720 = vpop.f32.mrf.mxu0
        %v1721 = vadd.f32 %v1616, %v1720
        %v1722 = vpop.f32.mrf.mxu0
        %1723 = vmatprep.mubr.f32.mxu0 %v1449
        %1724 = vmatmul.mubr.f32.gmra.mxu0 %v1448
        %v1725 = vpop.f32.mrf.mxu0
        %v1726 = vadd.f32 %v1621, %v1725
        %v1727 = vpop.f32.mrf.mxu0
        %1728 = vmatprep.mubr.f32.mxu0 %v1453
        %1729 = vmatmul.mubr.f32.gmra.mxu0 %v1452
        %v1730 = vpop.f32.mrf.mxu0
        %v1731 = vadd.f32 %v1626, %v1730
        %v1732 = vpop.f32.mrf.mxu0
        %1733 = vmatprep.mubr.f32.mxu0 %v1457
        %1734 = vmatmul.mubr.f32.gmra.mxu0 %v1456
        %v1735 = vpop.f32.mrf.mxu0
        %v1736 = vadd.f32 %v1631, %v1735
        %v1737 = vpop.f32.mrf.mxu0
        %1738 = vdwg.mxu0
        %1739 = vst [vmem:[%s271] sm:$0xff] %v1701
        %1740 = vst [vmem:[%s271 + $0x8] sm:$0xff] %v1706
        %1741 = vst [vmem:[%s271 + $0x10] sm:$0xff] %v1711
        %1742 = vst [vmem:[%s271 + $0x18] sm:$0xff] %v1716
        %1743 = vst [vmem:[%s271 + $0x20] sm:$0xff] %v1721
        %1744 = vst [vmem:[%s271 + $0x28] sm:$0xff] %v1726
        %1745 = vst [vmem:[%s271 + $0x30] sm:$0xff] %v1731
        %1746 = vst [vmem:[%s271 + $0x38] sm:$0xff] %v1736
        %s1747 = sand.u32 %s141, 1
        %s1748 = scalar_lea.sflag [#allocation4], %s1747
        %s1749 = sand.u32 %s141, 1
        %s1750 = smul.addr %s1749, 64
        %s1751 = scalar_lea.vmem [#allocation8], %s1750
        // Predicated region
        $region53: #{mlp_forward.1} parent=39 // pred_check
          %p1752 = pneg %p151
        $region54: #{mlp_forward.1} parent=39 // pred_check_branch
          %1754 = sbr.rel (%p1752) target = $region56
        $region55: #{mlp_forward.1} parent=39 // pred_region
          %s1755 = smul.u32 8, %s23
          %s1757 = ssub.s32 1024, 1024
          %1758 = vsyncadd %s1748, %s1757
          %s1759 = smul.addr %s1755, 128
          %s1760 = scalar_lea.hbm %s5, %s1759
          %s1761 = sshll.u32 %s1751, 4
          %s1762 = int_to_ptr.vmem [resolvable:$true] %s1761
          %1767 = dma.vmem_to_hbm [thread:$0]  %s1762, 1024, %s1760, %s1748, 128, 128, 8
        $region56: #{mlp_forward.1} parent=39 // pred_fallthru
          _
      $region40: #{mlp_forward.1} parent=5 // pred_fallthru
        _
      %p1768 = scmp.le.s32.totalorder 2, %s18
      // Predicated region
      $region57: #{mlp_forward.1} parent=5 // pred_check
        %p1769 = pneg %p1768
      $region58: #{mlp_forward.1} parent=5 // pred_check_branch
        %1771 = sbr.rel (%p1769) target = $region60
      $region59: #{mlp_forward.1} parent=5 // pred_region
        %s1772 = ssub.s32 %s18, 2
        // Predicated region
        $region61: #{mlp_forward.1} parent=59 // pred_check
          %p1773 = pneg %p157
        $region62: #{mlp_forward.1} parent=59 // pred_check_branch
          %1775 = sbr.rel (%p1773) target = $region64
        $region63: #{mlp_forward.1} parent=59 // pred_region
          %s1776 = sand.u32 %s142, 1
          %s1777 = scalar_lea.sflag [#allocation4], %s1776
          %s1778 = sand.u32 %s142, 1
          %s1779 = smul.addr %s1778, 64
          %s1780 = scalar_lea.vmem [#allocation8], %s1779
          %1781 = dma.done %s1777, 1024
        $region64: #{mlp_forward.1} parent=59 // pred_fallthru
          _
      $region60: #{mlp_forward.1} parent=5 // pred_fallthru
        _
    $region6: #{mlp_forward.1} parent=1 // loop_footer
      %s22 = sadd.s32 1, %s18
    $region7: #{mlp_forward.1} parent=1 // loop_footer_branch
      %17 = sbr.rel target = $region3
    $region8: #{mlp_forward.1} parent=1 // loop_exit
      _
    %1782 = vsyncpa [#allocation3], 1
    %s1783 = scalar_lea.sflag [#allocation3], 1
    %1784 = vsyncpa %s1783, 1
    %1785 = vsyncpa [#allocation6], 1
    %1786 = vsyncpa [#allocation4], 1
    %s1787 = scalar_lea.sflag [#allocation4], 1
    %1788 = vsyncpa %s1787, 1

</llo_original>
